<compile_context>
chip_gen: v7x
topology: tpu7x:2x2x1
jax: 0.10.0
libtpu: 0.0.40
codegen_flags: <defaults>
</compile_context>

<pallas_src>
import functools

import jax
import jax.numpy as jnp
from jax.experimental import pallas as pl
from jax.experimental.pallas import tpu as pltpu


KH = 7          # conv kernel height
KW = 7          # conv kernel width
PAD = (KH - 1) // 2


def _round_up(v, m):
    return (v + m - 1) // m * m


def _flat_pad(w):
    # Zero padding (in flattened pixels) on each side of a pooled map so every
    # conv tap read stays inside the scratch; rounded to a lane multiple so the
    # interior store is vreg-aligned.  Needs >= PAD*W + PAD.
    return _round_up(PAD * w + PAD, 128)


def spatial_gate_kernel(x_ref, w_ref, bnb_ref, o_ref, pad_ref, *, H, W):
    # x_ref   : (C, H*W) f32 VMEM   -- one batch element, lane-dense
    # w_ref   : (2*KH*KW,) f32 SMEM -- conv taps pre-scaled by folded BN scale,
    #                                  flat index = c*KH*KW + kh*KW + kw
    #                                  (c=0 -> channel-max map, c=1 -> channel-mean map)
    # bnb_ref : (1,) f32 SMEM       -- folded BN bias
    # o_ref   : (C, H*W) VMEM
    # pad_ref : (2, H*W + 2*P) f32 VMEM scratch (flat zero-padded pooled maps)
    C, HW = x_ref.shape
    P = _flat_pad(W)
    EXT = HW + 2 * PAD * W          # extended slice length: covers all 7 kh shifts
    e0 = P - PAD * W - PAD          # scratch offset of the kw=0 extended slice

    # --- ChannelPool: max / mean over the channel (sublane) axis --------------
    xv = x_ref[...].astype(jnp.float32)
    cmax = jnp.max(xv, axis=0, keepdims=True)                          # (1, HW)
    cmean = jnp.sum(xv, axis=0, keepdims=True) * jnp.float32(1.0 / C)  # (1, HW)

    # --- flat zero-padded pooled maps in the (tiny) scratch --------------------
    # Only the left/right borders need zeros; the interior is overwritten every
    # step.  (Borders are re-zeroed each step because with "parallel" grid
    # semantics a program_id==0 one-shot init would be wrong on multi-core chips.)
    zb = jnp.zeros((2, P), jnp.float32)
    pad_ref[pl.ds(0, 2), pl.ds(0, P)] = zb
    pad_ref[pl.ds(0, 2), pl.ds(P + HW, P)] = zb
    pad_ref[pl.ds(0, 1), pl.ds(P, HW)] = cmax
    pad_ref[pl.ds(1, 1), pl.ds(P, HW)] = cmean

    # Column index (mod W) of every position in an extended slice.  A tap that
    # would wrap across an image row in the flat layout is zeroed by this mask;
    # row (kh) out-of-range taps read the zero borders automatically.
    colmod = jax.lax.broadcasted_iota(jnp.int32, (1, EXT), 1) % W

    # --- 7x7 conv (2 -> 1 channel), BN scale already folded into the taps -----
    # Accumulate per-kh partial sums over the EXTENDED domain so the inner
    # 98-tap loop is pure FMA; the 7 realigning window-slices happen once at
    # the end instead of per tap.
    u = [jnp.zeros((1, EXT), jnp.float32) for _ in range(KH)]
    for kw in range(KW):
        shift = kw - PAD
        shifted = colmod + shift
        valid = jnp.logical_and(shifted >= 0, shifted < W)             # per-kw mask
        for c in range(2):
            ext = pad_ref[pl.ds(c, 1), pl.ds(e0 + kw, EXT)]            # 1 of 14 loads
            me = jnp.where(valid, ext, 0.0)
            for kh in range(KH):
                w = w_ref[c * KH * KW + kh * KW + kw]                  # SMEM scalar
                u[kh] = u[kh] + w * me

    acc = jnp.zeros((1, HW), jnp.float32)
    for kh in range(KH):
        acc = acc + u[kh][:, kh * W: kh * W + HW]                      # 7 slices total

    # --- BN bias + sigmoid gate, broadcast-multiply back onto x ---------------
    scale = jax.nn.sigmoid(acc + bnb_ref[0])                           # (1, HW)
    o_ref[...] = (x_ref[...].astype(jnp.float32) * scale).astype(o_ref.dtype)


def spatial_gate(x, conv_w, gamma, beta, running_mean, running_var, eps=1e-5):
    """x: (B, C, H, W). conv_w: (1, 2, KH, KW) in PyTorch OIHW layout.
    gamma/beta/running_mean/running_var: (1,) BatchNorm2d(1) parameters."""
    B, C, H, W = x.shape
    HW = H * W
    P = _flat_pad(W)

    # Fold inference-mode BatchNorm into the conv: y = s*conv(x) + b
    s = gamma / jnp.sqrt(running_var + eps)                            # (1,)
    w_folded = (conv_w[0] * s[0]).astype(jnp.float32).reshape(-1)      # (2*KH*KW,)
    b_folded = jnp.reshape(beta[0] - running_mean[0] * s[0], (1,)).astype(jnp.float32)

    # Lane-dense streaming layout (last dim = H*W, a multiple of 128 here).
    xf = x.reshape(B, C, HW)

    kernel = pl.pallas_call(
        functools.partial(spatial_gate_kernel, H=H, W=W),
        out_shape=jax.ShapeDtypeStruct((B, C, HW), x.dtype),
        grid_spec=pltpu.PrefetchScalarGridSpec(
            num_scalar_prefetch=0,
            grid=(B,),
            in_specs=[
                # one batch element per grid step (squeezed leading dim)
                pl.BlockSpec((None, C, HW), lambda b: (b, 0, 0)),
                # weights / bias: SMEM-resident, constant block index -> no re-DMA
                pl.BlockSpec((2 * KH * KW,), lambda b: (0,),
                             memory_space=pltpu.MemorySpace.SMEM),
                pl.BlockSpec((1,), lambda b: (0,),
                             memory_space=pltpu.MemorySpace.SMEM),
            ],
            out_specs=pl.BlockSpec((None, C, HW), lambda b: (b, 0, 0)),
            scratch_shapes=[pltpu.VMEM((2, HW + 2 * P), jnp.float32)],
        ),
        compiler_params=pltpu.CompilerParams(
            dimension_semantics=("parallel",),        # megacore sharding on v7x
            # Safe everywhere (v5e/v6e/v7x).  Raise (and enlarge tiles) on
            # v5e/v6e's 128 MiB VMEM once a spatial-tile axis is added.
            vmem_limit_bytes=32 * 1024 * 1024,
        ),
        input_output_aliases={0: 0},                  # donate x's HBM buffer
        cost_estimate=pl.CostEstimate(
            flops=int(B * HW * (3 * C + 4 * KH * KW)),
            transcendentals=int(B * HW),              # sigmoid
            bytes_accessed=int(2 * B * C * HW * 4),
        ),
    )
    out_flat = kernel(xf, w_folded, b_folded)
    return out_flat.reshape(B, C, H, W)


def spatial_gate_reference(x, conv_w, gamma, beta, running_mean, running_var, eps=1e-5):
    """Pure-JAX reference mirroring the PyTorch forward (inference-mode BN)."""
    cmax = jnp.max(x, axis=1, keepdims=True)
    cmean = jnp.mean(x, axis=1, keepdims=True)
    comp = jnp.concatenate([cmax, cmean], axis=1)                 # (B, 2, H, W)
    out = jax.lax.conv_general_dilated(
        comp, conv_w, window_strides=(1, 1),
        padding=((PAD, PAD), (PAD, PAD)),
        dimension_numbers=("NCHW", "OIHW", "NCHW"))               # (B, 1, H, W)
    inv = gamma / jnp.sqrt(running_var + eps)
    out = (out - running_mean[None, :, None, None]) * inv[None, :, None, None] \
          + beta[None, :, None, None]
    return x * jax.nn.sigmoid(out)


if __name__ == "__main__":
    B, C, H, W = 2, 4, 16, 16

    key = jax.random.PRNGKey(0)
    kx, kw, kg, kb, km, kv = jax.random.split(key, 6)
    x = jax.random.normal(kx, (B, C, H, W), jnp.float32)
    conv_w = jax.random.normal(kw, (1, 2, KH, KW), jnp.float32) * 0.1
    gamma = 1.0 + 0.1 * jax.random.normal(kg, (1,), jnp.float32)
    beta = 0.1 * jax.random.normal(kb, (1,), jnp.float32)
    running_mean = 0.1 * jax.random.normal(km, (1,), jnp.float32)
    running_var = 1.0 + 0.1 * jnp.abs(jax.random.normal(kv, (1,), jnp.float32))

    y_ref = spatial_gate_reference(x, conv_w, gamma, beta, running_mean, running_var)

    y = spatial_gate(x, conv_w, gamma, beta, running_mean, running_var)
    jax.block_until_ready(y)

    assert jnp.allclose(y, y_ref, atol=2e-5, rtol=1e-5), "mismatch vs reference"
    print("KERNEL_OK")
</pallas_src>

<mosaic_0001>
module attributes {stable_mosaic.version = 11 : i64} {
  func.func @spatial_gate_kernel(%arg0: i32, %arg1: memref<1x4x256xf32, #tpu.memory_space<vmem>>, %arg2: memref<98xf32, #tpu.memory_space<smem>>, %arg3: memref<1xf32, #tpu.memory_space<smem>>, %arg4: memref<1x4x256xf32, #tpu.memory_space<vmem>>, %arg5: memref<2x512xf32, #tpu.memory_space<vmem>>) attributes {dimension_semantics = [#tpu.dimension_semantics<parallel>], iteration_bounds = array<i64: 2>, scalar_prefetch = 0 : i64, scratch_operands = 1 : i64, tpu.core_type = #tpu.core_type<tc>, window_params = [{transform_indices = @transform_0, window_bounds = array<i64: 1, 4, 256>}, {transform_indices = @transform_1, window_bounds = array<i64: 98>}, {transform_indices = @transform_2, window_bounds = array<i64: 1>}, {transform_indices = @transform_3, window_bounds = array<i64: 1, 4, 256>}]} {
    %c0 = arith.constant 0 : index
    %c0_0 = arith.constant 0 : index
    %c0_1 = arith.constant 0 : index
    %0 = vector.load %arg1[%c0, %c0_0, %c0_1] : memref<1x4x256xf32, #tpu.memory_space<vmem>>, vector<1x4x256xf32>
    %1 = vector.shape_cast %0 : vector<1x4x256xf32> to vector<4x256xf32>
    %cst = arith.constant dense<0xFF800000> : vector<256xf32>
    %2 = vector.multi_reduction <maximumf>, %1, %cst [0] : vector<4x256xf32> to vector<256xf32>
    %3 = vector.shape_cast %2 : vector<256xf32> to vector<1x256xf32>
    %cst_2 = arith.constant dense<0.000000e+00> : vector<256xf32>
    %4 = vector.multi_reduction <add>, %1, %cst_2 [0] : vector<4x256xf32> to vector<256xf32>
    %5 = vector.shape_cast %4 : vector<256xf32> to vector<1x256xf32>
    %cst_3 = arith.constant 2.500000e-01 : f32
    %6 = vector.broadcast %cst_3 : f32 to vector<1x256xf32>
    %7 = arith.mulf %5, %6 : vector<1x256xf32>
    %cst_4 = arith.constant 0.000000e+00 : f32
    %8 = vector.broadcast %cst_4 : f32 to vector<2x128xf32>
    %c0_5 = arith.constant 0 : index
    %c0_6 = arith.constant 0 : index
    %9 = vector.load %arg5[%c0_5, %c0_6] : memref<2x512xf32, #tpu.memory_space<vmem>>, vector<2x128xf32>
    tpu.vector_store %arg5[%c0_5, %c0_6], %8 {strides = array<i32>} : memref<2x512xf32, #tpu.memory_space<vmem>>, vector<2x128xf32>,
    %c0_7 = arith.constant 0 : index
    %c384 = arith.constant 384 : index
    %10 = vector.load %arg5[%c0_7, %c384] : memref<2x512xf32, #tpu.memory_space<vmem>>, vector<2x128xf32>
    tpu.vector_store %arg5[%c0_7, %c384], %8 {strides = array<i32>} : memref<2x512xf32, #tpu.memory_space<vmem>>, vector<2x128xf32>,
    %c0_8 = arith.constant 0 : index
    %c128 = arith.constant 128 : index
    %11 = vector.load %arg5[%c0_8, %c128] : memref<2x512xf32, #tpu.memory_space<vmem>>, vector<1x256xf32>
    tpu.vector_store %arg5[%c0_8, %c128], %3 {strides = array<i32>} : memref<2x512xf32, #tpu.memory_space<vmem>>, vector<1x256xf32>,
    %c1 = arith.constant 1 : index
    %c128_9 = arith.constant 128 : index
    %12 = vector.load %arg5[%c1, %c128_9] : memref<2x512xf32, #tpu.memory_space<vmem>>, vector<1x256xf32>
    tpu.vector_store %arg5[%c1, %c128_9], %7 {strides = array<i32>} : memref<2x512xf32, #tpu.memory_space<vmem>>, vector<1x256xf32>,
    %13 = tpu.iota {dimensions = array<i32: 1>} : vector<1x352xi32>
    %c16_i32 = arith.constant 16 : i32
    %c0_i32 = arith.constant 0 : i32
    %14 = arith.cmpi eq, %c16_i32, %c0_i32 : i32
    %c1_i32 = arith.constant 1 : i32
    %15 = arith.select %14, %c1_i32, %c16_i32 : i32
    %16 = vector.broadcast %15 : i32 to vector<1x352xi32>
    %17 = arith.remsi %13, %16 : vector<1x352xi32>
    %c0_i32_10 = arith.constant 0 : i32
    %18 = vector.broadcast %c0_i32_10 : i32 to vector<1x352xi32>
    %19 = arith.cmpi ne, %17, %18 : vector<1x352xi32>
    %c0_i32_11 = arith.constant 0 : i32
    %20 = vector.broadcast %c0_i32_11 : i32 to vector<1x352xi32>
    %21 = arith.cmpi slt, %17, %20 : vector<1x352xi32>
    %c0_i32_12 = arith.constant 0 : i32
    %22 = arith.cmpi slt, %15, %c0_i32_12 : i32
    %23 = vector.broadcast %22 : i1 to vector<1x352xi1>
    %24 = vector.broadcast %23 : vector<1x352xi1> to vector<1x352xi1>
    %25 = arith.xori %21, %24 : vector<1x352xi1>
    %26 = arith.andi %25, %19 : vector<1x352xi1>
    %27 = vector.broadcast %15 : i32 to vector<1x352xi32>
    %28 = arith.addi %17, %27 : vector<1x352xi32>
    %29 = arith.select %26, %28, %17 : vector<1x352xi1>, vector<1x352xi32>
    %cst_13 = arith.constant 0.000000e+00 : f32
    %30 = vector.broadcast %cst_13 : f32 to vector<1x352xf32>
    %cst_14 = arith.constant 0.000000e+00 : f32
    %31 = vector.broadcast %cst_14 : f32 to vector<1x352xf32>
    %cst_15 = arith.constant 0.000000e+00 : f32
    %32 = vector.broadcast %cst_15 : f32 to vector<1x352xf32>
    %cst_16 = arith.constant 0.000000e+00 : f32
    %33 = vector.broadcast %cst_16 : f32 to vector<1x352xf32>
    %cst_17 = arith.constant 0.000000e+00 : f32
    %34 = vector.broadcast %cst_17 : f32 to vector<1x352xf32>
    %cst_18 = arith.constant 0.000000e+00 : f32
    %35 = vector.broadcast %cst_18 : f32 to vector<1x352xf32>
    %cst_19 = arith.constant 0.000000e+00 : f32
    %36 = vector.broadcast %cst_19 : f32 to vector<1x352xf32>
    %c-3_i32 = arith.constant -3 : i32
    %37 = vector.broadcast %c-3_i32 : i32 to vector<1x352xi32>
    %38 = arith.addi %29, %37 : vector<1x352xi32>
    %c0_i32_20 = arith.constant 0 : i32
    %39 = vector.broadcast %c0_i32_20 : i32 to vector<1x352xi32>
    %40 = arith.cmpi sge, %38, %39 : vector<1x352xi32>
    %c16_i32_21 = arith.constant 16 : i32
    %41 = vector.broadcast %c16_i32_21 : i32 to vector<1x352xi32>
    %42 = arith.cmpi slt, %38, %41 : vector<1x352xi32>
    %43 = arith.andi %40, %42 : vector<1x352xi1>
    %c0_22 = arith.constant 0 : index
    %c77 = arith.constant 77 : index
    %44 = vector.load %arg5[%c0_22, %c77] : memref<2x512xf32, #tpu.memory_space<vmem>>, vector<1x352xf32>
    %cst_23 = arith.constant 0.000000e+00 : f32
    %45 = vector.broadcast %cst_23 : f32 to vector<1x352xf32>
    %46 = arith.select %43, %44, %45 : vector<1x352xi1>, vector<1x352xf32>
    %c0_24 = arith.constant 0 : index
    %47 = memref.load %arg2[%c0_24] : memref<98xf32, #tpu.memory_space<smem>>
    %48 = vector.broadcast %47 : f32 to vector<1x352xf32>
    %49 = arith.mulf %48, %46 : vector<1x352xf32>
    %50 = arith.addf %30, %49 : vector<1x352xf32>
    %c7 = arith.constant 7 : index
    %51 = memref.load %arg2[%c7] : memref<98xf32, #tpu.memory_space<smem>>
    %52 = vector.broadcast %51 : f32 to vector<1x352xf32>
    %53 = arith.mulf %52, %46 : vector<1x352xf32>
    %54 = arith.addf %31, %53 : vector<1x352xf32>
    %c14 = arith.constant 14 : index
    %55 = memref.load %arg2[%c14] : memref<98xf32, #tpu.memory_space<smem>>
    %56 = vector.broadcast %55 : f32 to vector<1x352xf32>
    %57 = arith.mulf %56, %46 : vector<1x352xf32>
    %58 = arith.addf %32, %57 : vector<1x352xf32>
    %c21 = arith.constant 21 : index
    %59 = memref.load %arg2[%c21] : memref<98xf32, #tpu.memory_space<smem>>
    %60 = vector.broadcast %59 : f32 to vector<1x352xf32>
    %61 = arith.mulf %60, %46 : vector<1x352xf32>
    %62 = arith.addf %33, %61 : vector<1x352xf32>
    %c28 = arith.constant 28 : index
    %63 = memref.load %arg2[%c28] : memref<98xf32, #tpu.memory_space<smem>>
    %64 = vector.broadcast %63 : f32 to vector<1x352xf32>
    %65 = arith.mulf %64, %46 : vector<1x352xf32>
    %66 = arith.addf %34, %65 : vector<1x352xf32>
    %c35 = arith.constant 35 : index
    %67 = memref.load %arg2[%c35] : memref<98xf32, #tpu.memory_space<smem>>
    %68 = vector.broadcast %67 : f32 to vector<1x352xf32>
    %69 = arith.mulf %68, %46 : vector<1x352xf32>
    %70 = arith.addf %35, %69 : vector<1x352xf32>
    %c42 = arith.constant 42 : index
    %71 = memref.load %arg2[%c42] : memref<98xf32, #tpu.memory_space<smem>>
    %72 = vector.broadcast %71 : f32 to vector<1x352xf32>
    %73 = arith.mulf %72, %46 : vector<1x352xf32>
    %74 = arith.addf %36, %73 : vector<1x352xf32>
    %c1_25 = arith.constant 1 : index
    %c77_26 = arith.constant 77 : index
    %75 = vector.load %arg5[%c1_25, %c77_26] : memref<2x512xf32, #tpu.memory_space<vmem>>, vector<1x352xf32>
    %cst_27 = arith.constant 0.000000e+00 : f32
    %76 = vector.broadcast %cst_27 : f32 to vector<1x352xf32>
    %77 = arith.select %43, %75, %76 : vector<1x352xi1>, vector<1x352xf32>
    %c49 = arith.constant 49 : index
    %78 = memref.load %arg2[%c49] : memref<98xf32, #tpu.memory_space<smem>>
    %79 = vector.broadcast %78 : f32 to vector<1x352xf32>
    %80 = arith.mulf %79, %77 : vector<1x352xf32>
    %81 = arith.addf %50, %80 : vector<1x352xf32>
    %c56 = arith.constant 56 : index
    %82 = memref.load %arg2[%c56] : memref<98xf32, #tpu.memory_space<smem>>
    %83 = vector.broadcast %82 : f32 to vector<1x352xf32>
    %84 = arith.mulf %83, %77 : vector<1x352xf32>
    %85 = arith.addf %54, %84 : vector<1x352xf32>
    %c63 = arith.constant 63 : index
    %86 = memref.load %arg2[%c63] : memref<98xf32, #tpu.memory_space<smem>>
    %87 = vector.broadcast %86 : f32 to vector<1x352xf32>
    %88 = arith.mulf %87, %77 : vector<1x352xf32>
    %89 = arith.addf %58, %88 : vector<1x352xf32>
    %c70 = arith.constant 70 : index
    %90 = memref.load %arg2[%c70] : memref<98xf32, #tpu.memory_space<smem>>
    %91 = vector.broadcast %90 : f32 to vector<1x352xf32>
    %92 = arith.mulf %91, %77 : vector<1x352xf32>
    %93 = arith.addf %62, %92 : vector<1x352xf32>
    %c77_28 = arith.constant 77 : index
    %94 = memref.load %arg2[%c77_28] : memref<98xf32, #tpu.memory_space<smem>>
    %95 = vector.broadcast %94 : f32 to vector<1x352xf32>
    %96 = arith.mulf %95, %77 : vector<1x352xf32>
    %97 = arith.addf %66, %96 : vector<1x352xf32>
    %c84 = arith.constant 84 : index
    %98 = memref.load %arg2[%c84] : memref<98xf32, #tpu.memory_space<smem>>
    %99 = vector.broadcast %98 : f32 to vector<1x352xf32>
    %100 = arith.mulf %99, %77 : vector<1x352xf32>
    %101 = arith.addf %70, %100 : vector<1x352xf32>
    %c91 = arith.constant 91 : index
    %102 = memref.load %arg2[%c91] : memref<98xf32, #tpu.memory_space<smem>>
    %103 = vector.broadcast %102 : f32 to vector<1x352xf32>
    %104 = arith.mulf %103, %77 : vector<1x352xf32>
    %105 = arith.addf %74, %104 : vector<1x352xf32>
    %c-2_i32 = arith.constant -2 : i32
    %106 = vector.broadcast %c-2_i32 : i32 to vector<1x352xi32>
    %107 = arith.addi %29, %106 : vector<1x352xi32>
    %c0_i32_29 = arith.constant 0 : i32
    %108 = vector.broadcast %c0_i32_29 : i32 to vector<1x352xi32>
    %109 = arith.cmpi sge, %107, %108 : vector<1x352xi32>
    %c16_i32_30 = arith.constant 16 : i32
    %110 = vector.broadcast %c16_i32_30 : i32 to vector<1x352xi32>
    %111 = arith.cmpi slt, %107, %110 : vector<1x352xi32>
    %112 = arith.andi %109, %111 : vector<1x352xi1>
    %c0_31 = arith.constant 0 : index
    %c78 = arith.constant 78 : index
    %113 = vector.load %arg5[%c0_31, %c78] : memref<2x512xf32, #tpu.memory_space<vmem>>, vector<1x352xf32>
    %cst_32 = arith.constant 0.000000e+00 : f32
    %114 = vector.broadcast %cst_32 : f32 to vector<1x352xf32>
    %115 = arith.select %112, %113, %114 : vector<1x352xi1>, vector<1x352xf32>
    %c1_33 = arith.constant 1 : index
    %116 = memref.load %arg2[%c1_33] : memref<98xf32, #tpu.memory_space<smem>>
    %117 = vector.broadcast %116 : f32 to vector<1x352xf32>
    %118 = arith.mulf %117, %115 : vector<1x352xf32>
    %119 = arith.addf %81, %118 : vector<1x352xf32>
    %c8 = arith.constant 8 : index
    %120 = memref.load %arg2[%c8] : memref<98xf32, #tpu.memory_space<smem>>
    %121 = vector.broadcast %120 : f32 to vector<1x352xf32>
    %122 = arith.mulf %121, %115 : vector<1x352xf32>
    %123 = arith.addf %85, %122 : vector<1x352xf32>
    %c15 = arith.constant 15 : index
    %124 = memref.load %arg2[%c15] : memref<98xf32, #tpu.memory_space<smem>>
    %125 = vector.broadcast %124 : f32 to vector<1x352xf32>
    %126 = arith.mulf %125, %115 : vector<1x352xf32>
    %127 = arith.addf %89, %126 : vector<1x352xf32>
    %c22 = arith.constant 22 : index
    %128 = memref.load %arg2[%c22] : memref<98xf32, #tpu.memory_space<smem>>
    %129 = vector.broadcast %128 : f32 to vector<1x352xf32>
    %130 = arith.mulf %129, %115 : vector<1x352xf32>
    %131 = arith.addf %93, %130 : vector<1x352xf32>
    %c29 = arith.constant 29 : index
    %132 = memref.load %arg2[%c29] : memref<98xf32, #tpu.memory_space<smem>>
    %133 = vector.broadcast %132 : f32 to vector<1x352xf32>
    %134 = arith.mulf %133, %115 : vector<1x352xf32>
    %135 = arith.addf %97, %134 : vector<1x352xf32>
    %c36 = arith.constant 36 : index
    %136 = memref.load %arg2[%c36] : memref<98xf32, #tpu.memory_space<smem>>
    %137 = vector.broadcast %136 : f32 to vector<1x352xf32>
    %138 = arith.mulf %137, %115 : vector<1x352xf32>
    %139 = arith.addf %101, %138 : vector<1x352xf32>
    %c43 = arith.constant 43 : index
    %140 = memref.load %arg2[%c43] : memref<98xf32, #tpu.memory_space<smem>>
    %141 = vector.broadcast %140 : f32 to vector<1x352xf32>
    %142 = arith.mulf %141, %115 : vector<1x352xf32>
    %143 = arith.addf %105, %142 : vector<1x352xf32>
    %c1_34 = arith.constant 1 : index
    %c78_35 = arith.constant 78 : index
    %144 = vector.load %arg5[%c1_34, %c78_35] : memref<2x512xf32, #tpu.memory_space<vmem>>, vector<1x352xf32>
    %cst_36 = arith.constant 0.000000e+00 : f32
    %145 = vector.broadcast %cst_36 : f32 to vector<1x352xf32>
    %146 = arith.select %112, %144, %145 : vector<1x352xi1>, vector<1x352xf32>
    %c50 = arith.constant 50 : index
    %147 = memref.load %arg2[%c50] : memref<98xf32, #tpu.memory_space<smem>>
    %148 = vector.broadcast %147 : f32 to vector<1x352xf32>
    %149 = arith.mulf %148, %146 : vector<1x352xf32>
    %150 = arith.addf %119, %149 : vector<1x352xf32>
    %c57 = arith.constant 57 : index
    %151 = memref.load %arg2[%c57] : memref<98xf32, #tpu.memory_space<smem>>
    %152 = vector.broadcast %151 : f32 to vector<1x352xf32>
    %153 = arith.mulf %152, %146 : vector<1x352xf32>
    %154 = arith.addf %123, %153 : vector<1x352xf32>
    %c64 = arith.constant 64 : index
    %155 = memref.load %arg2[%c64] : memref<98xf32, #tpu.memory_space<smem>>
    %156 = vector.broadcast %155 : f32 to vector<1x352xf32>
    %157 = arith.mulf %156, %146 : vector<1x352xf32>
    %158 = arith.addf %127, %157 : vector<1x352xf32>
    %c71 = arith.constant 71 : index
    %159 = memref.load %arg2[%c71] : memref<98xf32, #tpu.memory_space<smem>>
    %160 = vector.broadcast %159 : f32 to vector<1x352xf32>
    %161 = arith.mulf %160, %146 : vector<1x352xf32>
    %162 = arith.addf %131, %161 : vector<1x352xf32>
    %c78_37 = arith.constant 78 : index
    %163 = memref.load %arg2[%c78_37] : memref<98xf32, #tpu.memory_space<smem>>
    %164 = vector.broadcast %163 : f32 to vector<1x352xf32>
    %165 = arith.mulf %164, %146 : vector<1x352xf32>
    %166 = arith.addf %135, %165 : vector<1x352xf32>
    %c85 = arith.constant 85 : index
    %167 = memref.load %arg2[%c85] : memref<98xf32, #tpu.memory_space<smem>>
    %168 = vector.broadcast %167 : f32 to vector<1x352xf32>
    %169 = arith.mulf %168, %146 : vector<1x352xf32>
    %170 = arith.addf %139, %169 : vector<1x352xf32>
    %c92 = arith.constant 92 : index
    %171 = memref.load %arg2[%c92] : memref<98xf32, #tpu.memory_space<smem>>
    %172 = vector.broadcast %171 : f32 to vector<1x352xf32>
    %173 = arith.mulf %172, %146 : vector<1x352xf32>
    %174 = arith.addf %143, %173 : vector<1x352xf32>
    %c-1_i32 = arith.constant -1 : i32
    %175 = vector.broadcast %c-1_i32 : i32 to vector<1x352xi32>
    %176 = arith.addi %29, %175 : vector<1x352xi32>
    %c0_i32_38 = arith.constant 0 : i32
    %177 = vector.broadcast %c0_i32_38 : i32 to vector<1x352xi32>
    %178 = arith.cmpi sge, %176, %177 : vector<1x352xi32>
    %c16_i32_39 = arith.constant 16 : i32
    %179 = vector.broadcast %c16_i32_39 : i32 to vector<1x352xi32>
    %180 = arith.cmpi slt, %176, %179 : vector<1x352xi32>
    %181 = arith.andi %178, %180 : vector<1x352xi1>
    %c0_40 = arith.constant 0 : index
    %c79 = arith.constant 79 : index
    %182 = vector.load %arg5[%c0_40, %c79] : memref<2x512xf32, #tpu.memory_space<vmem>>, vector<1x352xf32>
    %cst_41 = arith.constant 0.000000e+00 : f32
    %183 = vector.broadcast %cst_41 : f32 to vector<1x352xf32>
    %184 = arith.select %181, %182, %183 : vector<1x352xi1>, vector<1x352xf32>
    %c2 = arith.constant 2 : index
    %185 = memref.load %arg2[%c2] : memref<98xf32, #tpu.memory_space<smem>>
    %186 = vector.broadcast %185 : f32 to vector<1x352xf32>
    %187 = arith.mulf %186, %184 : vector<1x352xf32>
    %188 = arith.addf %150, %187 : vector<1x352xf32>
    %c9 = arith.constant 9 : index
    %189 = memref.load %arg2[%c9] : memref<98xf32, #tpu.memory_space<smem>>
    %190 = vector.broadcast %189 : f32 to vector<1x352xf32>
    %191 = arith.mulf %190, %184 : vector<1x352xf32>
    %192 = arith.addf %154, %191 : vector<1x352xf32>
    %c16 = arith.constant 16 : index
    %193 = memref.load %arg2[%c16] : memref<98xf32, #tpu.memory_space<smem>>
    %194 = vector.broadcast %193 : f32 to vector<1x352xf32>
    %195 = arith.mulf %194, %184 : vector<1x352xf32>
    %196 = arith.addf %158, %195 : vector<1x352xf32>
    %c23 = arith.constant 23 : index
    %197 = memref.load %arg2[%c23] : memref<98xf32, #tpu.memory_space<smem>>
    %198 = vector.broadcast %197 : f32 to vector<1x352xf32>
    %199 = arith.mulf %198, %184 : vector<1x352xf32>
    %200 = arith.addf %162, %199 : vector<1x352xf32>
    %c30 = arith.constant 30 : index
    %201 = memref.load %arg2[%c30] : memref<98xf32, #tpu.memory_space<smem>>
    %202 = vector.broadcast %201 : f32 to vector<1x352xf32>
    %203 = arith.mulf %202, %184 : vector<1x352xf32>
    %204 = arith.addf %166, %203 : vector<1x352xf32>
    %c37 = arith.constant 37 : index
    %205 = memref.load %arg2[%c37] : memref<98xf32, #tpu.memory_space<smem>>
    %206 = vector.broadcast %205 : f32 to vector<1x352xf32>
    %207 = arith.mulf %206, %184 : vector<1x352xf32>
    %208 = arith.addf %170, %207 : vector<1x352xf32>
    %c44 = arith.constant 44 : index
    %209 = memref.load %arg2[%c44] : memref<98xf32, #tpu.memory_space<smem>>
    %210 = vector.broadcast %209 : f32 to vector<1x352xf32>
    %211 = arith.mulf %210, %184 : vector<1x352xf32>
    %212 = arith.addf %174, %211 : vector<1x352xf32>
    %c1_42 = arith.constant 1 : index
    %c79_43 = arith.constant 79 : index
    %213 = vector.load %arg5[%c1_42, %c79_43] : memref<2x512xf32, #tpu.memory_space<vmem>>, vector<1x352xf32>
    %cst_44 = arith.constant 0.000000e+00 : f32
    %214 = vector.broadcast %cst_44 : f32 to vector<1x352xf32>
    %215 = arith.select %181, %213, %214 : vector<1x352xi1>, vector<1x352xf32>
    %c51 = arith.constant 51 : index
    %216 = memref.load %arg2[%c51] : memref<98xf32, #tpu.memory_space<smem>>
    %217 = vector.broadcast %216 : f32 to vector<1x352xf32>
    %218 = arith.mulf %217, %215 : vector<1x352xf32>
    %219 = arith.addf %188, %218 : vector<1x352xf32>
    %c58 = arith.constant 58 : index
    %220 = memref.load %arg2[%c58] : memref<98xf32, #tpu.memory_space<smem>>
    %221 = vector.broadcast %220 : f32 to vector<1x352xf32>
    %222 = arith.mulf %221, %215 : vector<1x352xf32>
    %223 = arith.addf %192, %222 : vector<1x352xf32>
    %c65 = arith.constant 65 : index
    %224 = memref.load %arg2[%c65] : memref<98xf32, #tpu.memory_space<smem>>
    %225 = vector.broadcast %224 : f32 to vector<1x352xf32>
    %226 = arith.mulf %225, %215 : vector<1x352xf32>
    %227 = arith.addf %196, %226 : vector<1x352xf32>
    %c72 = arith.constant 72 : index
    %228 = memref.load %arg2[%c72] : memref<98xf32, #tpu.memory_space<smem>>
    %229 = vector.broadcast %228 : f32 to vector<1x352xf32>
    %230 = arith.mulf %229, %215 : vector<1x352xf32>
    %231 = arith.addf %200, %230 : vector<1x352xf32>
    %c79_45 = arith.constant 79 : index
    %232 = memref.load %arg2[%c79_45] : memref<98xf32, #tpu.memory_space<smem>>
    %233 = vector.broadcast %232 : f32 to vector<1x352xf32>
    %234 = arith.mulf %233, %215 : vector<1x352xf32>
    %235 = arith.addf %204, %234 : vector<1x352xf32>
    %c86 = arith.constant 86 : index
    %236 = memref.load %arg2[%c86] : memref<98xf32, #tpu.memory_space<smem>>
    %237 = vector.broadcast %236 : f32 to vector<1x352xf32>
    %238 = arith.mulf %237, %215 : vector<1x352xf32>
    %239 = arith.addf %208, %238 : vector<1x352xf32>
    %c93 = arith.constant 93 : index
    %240 = memref.load %arg2[%c93] : memref<98xf32, #tpu.memory_space<smem>>
    %241 = vector.broadcast %240 : f32 to vector<1x352xf32>
    %242 = arith.mulf %241, %215 : vector<1x352xf32>
    %243 = arith.addf %212, %242 : vector<1x352xf32>
    %c0_i32_46 = arith.constant 0 : i32
    %244 = vector.broadcast %c0_i32_46 : i32 to vector<1x352xi32>
    %245 = arith.addi %29, %244 : vector<1x352xi32>
    %c0_i32_47 = arith.constant 0 : i32
    %246 = vector.broadcast %c0_i32_47 : i32 to vector<1x352xi32>
    %247 = arith.cmpi sge, %245, %246 : vector<1x352xi32>
    %c16_i32_48 = arith.constant 16 : i32
    %248 = vector.broadcast %c16_i32_48 : i32 to vector<1x352xi32>
    %249 = arith.cmpi slt, %245, %248 : vector<1x352xi32>
    %250 = arith.andi %247, %249 : vector<1x352xi1>
    %c0_49 = arith.constant 0 : index
    %c80 = arith.constant 80 : index
    %251 = vector.load %arg5[%c0_49, %c80] : memref<2x512xf32, #tpu.memory_space<vmem>>, vector<1x352xf32>
    %cst_50 = arith.constant 0.000000e+00 : f32
    %252 = vector.broadcast %cst_50 : f32 to vector<1x352xf32>
    %253 = arith.select %250, %251, %252 : vector<1x352xi1>, vector<1x352xf32>
    %c3 = arith.constant 3 : index
    %254 = memref.load %arg2[%c3] : memref<98xf32, #tpu.memory_space<smem>>
    %255 = vector.broadcast %254 : f32 to vector<1x352xf32>
    %256 = arith.mulf %255, %253 : vector<1x352xf32>
    %257 = arith.addf %219, %256 : vector<1x352xf32>
    %c10 = arith.constant 10 : index
    %258 = memref.load %arg2[%c10] : memref<98xf32, #tpu.memory_space<smem>>
    %259 = vector.broadcast %258 : f32 to vector<1x352xf32>
    %260 = arith.mulf %259, %253 : vector<1x352xf32>
    %261 = arith.addf %223, %260 : vector<1x352xf32>
    %c17 = arith.constant 17 : index
    %262 = memref.load %arg2[%c17] : memref<98xf32, #tpu.memory_space<smem>>
    %263 = vector.broadcast %262 : f32 to vector<1x352xf32>
    %264 = arith.mulf %263, %253 : vector<1x352xf32>
    %265 = arith.addf %227, %264 : vector<1x352xf32>
    %c24 = arith.constant 24 : index
    %266 = memref.load %arg2[%c24] : memref<98xf32, #tpu.memory_space<smem>>
    %267 = vector.broadcast %266 : f32 to vector<1x352xf32>
    %268 = arith.mulf %267, %253 : vector<1x352xf32>
    %269 = arith.addf %231, %268 : vector<1x352xf32>
    %c31 = arith.constant 31 : index
    %270 = memref.load %arg2[%c31] : memref<98xf32, #tpu.memory_space<smem>>
    %271 = vector.broadcast %270 : f32 to vector<1x352xf32>
    %272 = arith.mulf %271, %253 : vector<1x352xf32>
    %273 = arith.addf %235, %272 : vector<1x352xf32>
    %c38 = arith.constant 38 : index
    %274 = memref.load %arg2[%c38] : memref<98xf32, #tpu.memory_space<smem>>
    %275 = vector.broadcast %274 : f32 to vector<1x352xf32>
    %276 = arith.mulf %275, %253 : vector<1x352xf32>
    %277 = arith.addf %239, %276 : vector<1x352xf32>
    %c45 = arith.constant 45 : index
    %278 = memref.load %arg2[%c45] : memref<98xf32, #tpu.memory_space<smem>>
    %279 = vector.broadcast %278 : f32 to vector<1x352xf32>
    %280 = arith.mulf %279, %253 : vector<1x352xf32>
    %281 = arith.addf %243, %280 : vector<1x352xf32>
    %c1_51 = arith.constant 1 : index
    %c80_52 = arith.constant 80 : index
    %282 = vector.load %arg5[%c1_51, %c80_52] : memref<2x512xf32, #tpu.memory_space<vmem>>, vector<1x352xf32>
    %cst_53 = arith.constant 0.000000e+00 : f32
    %283 = vector.broadcast %cst_53 : f32 to vector<1x352xf32>
    %284 = arith.select %250, %282, %283 : vector<1x352xi1>, vector<1x352xf32>
    %c52 = arith.constant 52 : index
    %285 = memref.load %arg2[%c52] : memref<98xf32, #tpu.memory_space<smem>>
    %286 = vector.broadcast %285 : f32 to vector<1x352xf32>
    %287 = arith.mulf %286, %284 : vector<1x352xf32>
    %288 = arith.addf %257, %287 : vector<1x352xf32>
    %c59 = arith.constant 59 : index
    %289 = memref.load %arg2[%c59] : memref<98xf32, #tpu.memory_space<smem>>
    %290 = vector.broadcast %289 : f32 to vector<1x352xf32>
    %291 = arith.mulf %290, %284 : vector<1x352xf32>
    %292 = arith.addf %261, %291 : vector<1x352xf32>
    %c66 = arith.constant 66 : index
    %293 = memref.load %arg2[%c66] : memref<98xf32, #tpu.memory_space<smem>>
    %294 = vector.broadcast %293 : f32 to vector<1x352xf32>
    %295 = arith.mulf %294, %284 : vector<1x352xf32>
    %296 = arith.addf %265, %295 : vector<1x352xf32>
    %c73 = arith.constant 73 : index
    %297 = memref.load %arg2[%c73] : memref<98xf32, #tpu.memory_space<smem>>
    %298 = vector.broadcast %297 : f32 to vector<1x352xf32>
    %299 = arith.mulf %298, %284 : vector<1x352xf32>
    %300 = arith.addf %269, %299 : vector<1x352xf32>
    %c80_54 = arith.constant 80 : index
    %301 = memref.load %arg2[%c80_54] : memref<98xf32, #tpu.memory_space<smem>>
    %302 = vector.broadcast %301 : f32 to vector<1x352xf32>
    %303 = arith.mulf %302, %284 : vector<1x352xf32>
    %304 = arith.addf %273, %303 : vector<1x352xf32>
    %c87 = arith.constant 87 : index
    %305 = memref.load %arg2[%c87] : memref<98xf32, #tpu.memory_space<smem>>
    %306 = vector.broadcast %305 : f32 to vector<1x352xf32>
    %307 = arith.mulf %306, %284 : vector<1x352xf32>
    %308 = arith.addf %277, %307 : vector<1x352xf32>
    %c94 = arith.constant 94 : index
    %309 = memref.load %arg2[%c94] : memref<98xf32, #tpu.memory_space<smem>>
    %310 = vector.broadcast %309 : f32 to vector<1x352xf32>
    %311 = arith.mulf %310, %284 : vector<1x352xf32>
    %312 = arith.addf %281, %311 : vector<1x352xf32>
    %c1_i32_55 = arith.constant 1 : i32
    %313 = vector.broadcast %c1_i32_55 : i32 to vector<1x352xi32>
    %314 = arith.addi %29, %313 : vector<1x352xi32>
    %c0_i32_56 = arith.constant 0 : i32
    %315 = vector.broadcast %c0_i32_56 : i32 to vector<1x352xi32>
    %316 = arith.cmpi sge, %314, %315 : vector<1x352xi32>
    %c16_i32_57 = arith.constant 16 : i32
    %317 = vector.broadcast %c16_i32_57 : i32 to vector<1x352xi32>
    %318 = arith.cmpi slt, %314, %317 : vector<1x352xi32>
    %319 = arith.andi %316, %318 : vector<1x352xi1>
    %c0_58 = arith.constant 0 : index
    %c81 = arith.constant 81 : index
    %320 = vector.load %arg5[%c0_58, %c81] : memref<2x512xf32, #tpu.memory_space<vmem>>, vector<1x352xf32>
    %cst_59 = arith.constant 0.000000e+00 : f32
    %321 = vector.broadcast %cst_59 : f32 to vector<1x352xf32>
    %322 = arith.select %319, %320, %321 : vector<1x352xi1>, vector<1x352xf32>
    %c4 = arith.constant 4 : index
    %323 = memref.load %arg2[%c4] : memref<98xf32, #tpu.memory_space<smem>>
    %324 = vector.broadcast %323 : f32 to vector<1x352xf32>
    %325 = arith.mulf %324, %322 : vector<1x352xf32>
    %326 = arith.addf %288, %325 : vector<1x352xf32>
    %c11 = arith.constant 11 : index
    %327 = memref.load %arg2[%c11] : memref<98xf32, #tpu.memory_space<smem>>
    %328 = vector.broadcast %327 : f32 to vector<1x352xf32>
    %329 = arith.mulf %328, %322 : vector<1x352xf32>
    %330 = arith.addf %292, %329 : vector<1x352xf32>
    %c18 = arith.constant 18 : index
    %331 = memref.load %arg2[%c18] : memref<98xf32, #tpu.memory_space<smem>>
    %332 = vector.broadcast %331 : f32 to vector<1x352xf32>
    %333 = arith.mulf %332, %322 : vector<1x352xf32>
    %334 = arith.addf %296, %333 : vector<1x352xf32>
    %c25 = arith.constant 25 : index
    %335 = memref.load %arg2[%c25] : memref<98xf32, #tpu.memory_space<smem>>
    %336 = vector.broadcast %335 : f32 to vector<1x352xf32>
    %337 = arith.mulf %336, %322 : vector<1x352xf32>
    %338 = arith.addf %300, %337 : vector<1x352xf32>
    %c32 = arith.constant 32 : index
    %339 = memref.load %arg2[%c32] : memref<98xf32, #tpu.memory_space<smem>>
    %340 = vector.broadcast %339 : f32 to vector<1x352xf32>
    %341 = arith.mulf %340, %322 : vector<1x352xf32>
    %342 = arith.addf %304, %341 : vector<1x352xf32>
    %c39 = arith.constant 39 : index
    %343 = memref.load %arg2[%c39] : memref<98xf32, #tpu.memory_space<smem>>
    %344 = vector.broadcast %343 : f32 to vector<1x352xf32>
    %345 = arith.mulf %344, %322 : vector<1x352xf32>
    %346 = arith.addf %308, %345 : vector<1x352xf32>
    %c46 = arith.constant 46 : index
    %347 = memref.load %arg2[%c46] : memref<98xf32, #tpu.memory_space<smem>>
    %348 = vector.broadcast %347 : f32 to vector<1x352xf32>
    %349 = arith.mulf %348, %322 : vector<1x352xf32>
    %350 = arith.addf %312, %349 : vector<1x352xf32>
    %c1_60 = arith.constant 1 : index
    %c81_61 = arith.constant 81 : index
    %351 = vector.load %arg5[%c1_60, %c81_61] : memref<2x512xf32, #tpu.memory_space<vmem>>, vector<1x352xf32>
    %cst_62 = arith.constant 0.000000e+00 : f32
    %352 = vector.broadcast %cst_62 : f32 to vector<1x352xf32>
    %353 = arith.select %319, %351, %352 : vector<1x352xi1>, vector<1x352xf32>
    %c53 = arith.constant 53 : index
    %354 = memref.load %arg2[%c53] : memref<98xf32, #tpu.memory_space<smem>>
    %355 = vector.broadcast %354 : f32 to vector<1x352xf32>
    %356 = arith.mulf %355, %353 : vector<1x352xf32>
    %357 = arith.addf %326, %356 : vector<1x352xf32>
    %c60 = arith.constant 60 : index
    %358 = memref.load %arg2[%c60] : memref<98xf32, #tpu.memory_space<smem>>
    %359 = vector.broadcast %358 : f32 to vector<1x352xf32>
    %360 = arith.mulf %359, %353 : vector<1x352xf32>
    %361 = arith.addf %330, %360 : vector<1x352xf32>
    %c67 = arith.constant 67 : index
    %362 = memref.load %arg2[%c67] : memref<98xf32, #tpu.memory_space<smem>>
    %363 = vector.broadcast %362 : f32 to vector<1x352xf32>
    %364 = arith.mulf %363, %353 : vector<1x352xf32>
    %365 = arith.addf %334, %364 : vector<1x352xf32>
    %c74 = arith.constant 74 : index
    %366 = memref.load %arg2[%c74] : memref<98xf32, #tpu.memory_space<smem>>
    %367 = vector.broadcast %366 : f32 to vector<1x352xf32>
    %368 = arith.mulf %367, %353 : vector<1x352xf32>
    %369 = arith.addf %338, %368 : vector<1x352xf32>
    %c81_63 = arith.constant 81 : index
    %370 = memref.load %arg2[%c81_63] : memref<98xf32, #tpu.memory_space<smem>>
    %371 = vector.broadcast %370 : f32 to vector<1x352xf32>
    %372 = arith.mulf %371, %353 : vector<1x352xf32>
    %373 = arith.addf %342, %372 : vector<1x352xf32>
    %c88 = arith.constant 88 : index
    %374 = memref.load %arg2[%c88] : memref<98xf32, #tpu.memory_space<smem>>
    %375 = vector.broadcast %374 : f32 to vector<1x352xf32>
    %376 = arith.mulf %375, %353 : vector<1x352xf32>
    %377 = arith.addf %346, %376 : vector<1x352xf32>
    %c95 = arith.constant 95 : index
    %378 = memref.load %arg2[%c95] : memref<98xf32, #tpu.memory_space<smem>>
    %379 = vector.broadcast %378 : f32 to vector<1x352xf32>
    %380 = arith.mulf %379, %353 : vector<1x352xf32>
    %381 = arith.addf %350, %380 : vector<1x352xf32>
    %c2_i32 = arith.constant 2 : i32
    %382 = vector.broadcast %c2_i32 : i32 to vector<1x352xi32>
    %383 = arith.addi %29, %382 : vector<1x352xi32>
    %c0_i32_64 = arith.constant 0 : i32
    %384 = vector.broadcast %c0_i32_64 : i32 to vector<1x352xi32>
    %385 = arith.cmpi sge, %383, %384 : vector<1x352xi32>
    %c16_i32_65 = arith.constant 16 : i32
    %386 = vector.broadcast %c16_i32_65 : i32 to vector<1x352xi32>
    %387 = arith.cmpi slt, %383, %386 : vector<1x352xi32>
    %388 = arith.andi %385, %387 : vector<1x352xi1>
    %c0_66 = arith.constant 0 : index
    %c82 = arith.constant 82 : index
    %389 = vector.load %arg5[%c0_66, %c82] : memref<2x512xf32, #tpu.memory_space<vmem>>, vector<1x352xf32>
    %cst_67 = arith.constant 0.000000e+00 : f32
    %390 = vector.broadcast %cst_67 : f32 to vector<1x352xf32>
    %391 = arith.select %388, %389, %390 : vector<1x352xi1>, vector<1x352xf32>
    %c5 = arith.constant 5 : index
    %392 = memref.load %arg2[%c5] : memref<98xf32, #tpu.memory_space<smem>>
    %393 = vector.broadcast %392 : f32 to vector<1x352xf32>
    %394 = arith.mulf %393, %391 : vector<1x352xf32>
    %395 = arith.addf %357, %394 : vector<1x352xf32>
    %c12 = arith.constant 12 : index
    %396 = memref.load %arg2[%c12] : memref<98xf32, #tpu.memory_space<smem>>
    %397 = vector.broadcast %396 : f32 to vector<1x352xf32>
    %398 = arith.mulf %397, %391 : vector<1x352xf32>
    %399 = arith.addf %361, %398 : vector<1x352xf32>
    %c19 = arith.constant 19 : index
    %400 = memref.load %arg2[%c19] : memref<98xf32, #tpu.memory_space<smem>>
    %401 = vector.broadcast %400 : f32 to vector<1x352xf32>
    %402 = arith.mulf %401, %391 : vector<1x352xf32>
    %403 = arith.addf %365, %402 : vector<1x352xf32>
    %c26 = arith.constant 26 : index
    %404 = memref.load %arg2[%c26] : memref<98xf32, #tpu.memory_space<smem>>
    %405 = vector.broadcast %404 : f32 to vector<1x352xf32>
    %406 = arith.mulf %405, %391 : vector<1x352xf32>
    %407 = arith.addf %369, %406 : vector<1x352xf32>
    %c33 = arith.constant 33 : index
    %408 = memref.load %arg2[%c33] : memref<98xf32, #tpu.memory_space<smem>>
    %409 = vector.broadcast %408 : f32 to vector<1x352xf32>
    %410 = arith.mulf %409, %391 : vector<1x352xf32>
    %411 = arith.addf %373, %410 : vector<1x352xf32>
    %c40 = arith.constant 40 : index
    %412 = memref.load %arg2[%c40] : memref<98xf32, #tpu.memory_space<smem>>
    %413 = vector.broadcast %412 : f32 to vector<1x352xf32>
    %414 = arith.mulf %413, %391 : vector<1x352xf32>
    %415 = arith.addf %377, %414 : vector<1x352xf32>
    %c47 = arith.constant 47 : index
    %416 = memref.load %arg2[%c47] : memref<98xf32, #tpu.memory_space<smem>>
    %417 = vector.broadcast %416 : f32 to vector<1x352xf32>
    %418 = arith.mulf %417, %391 : vector<1x352xf32>
    %419 = arith.addf %381, %418 : vector<1x352xf32>
    %c1_68 = arith.constant 1 : index
    %c82_69 = arith.constant 82 : index
    %420 = vector.load %arg5[%c1_68, %c82_69] : memref<2x512xf32, #tpu.memory_space<vmem>>, vector<1x352xf32>
    %cst_70 = arith.constant 0.000000e+00 : f32
    %421 = vector.broadcast %cst_70 : f32 to vector<1x352xf32>
    %422 = arith.select %388, %420, %421 : vector<1x352xi1>, vector<1x352xf32>
    %c54 = arith.constant 54 : index
    %423 = memref.load %arg2[%c54] : memref<98xf32, #tpu.memory_space<smem>>
    %424 = vector.broadcast %423 : f32 to vector<1x352xf32>
    %425 = arith.mulf %424, %422 : vector<1x352xf32>
    %426 = arith.addf %395, %425 : vector<1x352xf32>
    %c61 = arith.constant 61 : index
    %427 = memref.load %arg2[%c61] : memref<98xf32, #tpu.memory_space<smem>>
    %428 = vector.broadcast %427 : f32 to vector<1x352xf32>
    %429 = arith.mulf %428, %422 : vector<1x352xf32>
    %430 = arith.addf %399, %429 : vector<1x352xf32>
    %c68 = arith.constant 68 : index
    %431 = memref.load %arg2[%c68] : memref<98xf32, #tpu.memory_space<smem>>
    %432 = vector.broadcast %431 : f32 to vector<1x352xf32>
    %433 = arith.mulf %432, %422 : vector<1x352xf32>
    %434 = arith.addf %403, %433 : vector<1x352xf32>
    %c75 = arith.constant 75 : index
    %435 = memref.load %arg2[%c75] : memref<98xf32, #tpu.memory_space<smem>>
    %436 = vector.broadcast %435 : f32 to vector<1x352xf32>
    %437 = arith.mulf %436, %422 : vector<1x352xf32>
    %438 = arith.addf %407, %437 : vector<1x352xf32>
    %c82_71 = arith.constant 82 : index
    %439 = memref.load %arg2[%c82_71] : memref<98xf32, #tpu.memory_space<smem>>
    %440 = vector.broadcast %439 : f32 to vector<1x352xf32>
    %441 = arith.mulf %440, %422 : vector<1x352xf32>
    %442 = arith.addf %411, %441 : vector<1x352xf32>
    %c89 = arith.constant 89 : index
    %443 = memref.load %arg2[%c89] : memref<98xf32, #tpu.memory_space<smem>>
    %444 = vector.broadcast %443 : f32 to vector<1x352xf32>
    %445 = arith.mulf %444, %422 : vector<1x352xf32>
    %446 = arith.addf %415, %445 : vector<1x352xf32>
    %c96 = arith.constant 96 : index
    %447 = memref.load %arg2[%c96] : memref<98xf32, #tpu.memory_space<smem>>
    %448 = vector.broadcast %447 : f32 to vector<1x352xf32>
    %449 = arith.mulf %448, %422 : vector<1x352xf32>
    %450 = arith.addf %419, %449 : vector<1x352xf32>
    %c3_i32 = arith.constant 3 : i32
    %451 = vector.broadcast %c3_i32 : i32 to vector<1x352xi32>
    %452 = arith.addi %29, %451 : vector<1x352xi32>
    %c0_i32_72 = arith.constant 0 : i32
    %453 = vector.broadcast %c0_i32_72 : i32 to vector<1x352xi32>
    %454 = arith.cmpi sge, %452, %453 : vector<1x352xi32>
    %c16_i32_73 = arith.constant 16 : i32
    %455 = vector.broadcast %c16_i32_73 : i32 to vector<1x352xi32>
    %456 = arith.cmpi slt, %452, %455 : vector<1x352xi32>
    %457 = arith.andi %454, %456 : vector<1x352xi1>
    %c0_74 = arith.constant 0 : index
    %c83 = arith.constant 83 : index
    %458 = vector.load %arg5[%c0_74, %c83] : memref<2x512xf32, #tpu.memory_space<vmem>>, vector<1x352xf32>
    %cst_75 = arith.constant 0.000000e+00 : f32
    %459 = vector.broadcast %cst_75 : f32 to vector<1x352xf32>
    %460 = arith.select %457, %458, %459 : vector<1x352xi1>, vector<1x352xf32>
    %c6 = arith.constant 6 : index
    %461 = memref.load %arg2[%c6] : memref<98xf32, #tpu.memory_space<smem>>
    %462 = vector.broadcast %461 : f32 to vector<1x352xf32>
    %463 = arith.mulf %462, %460 : vector<1x352xf32>
    %464 = arith.addf %426, %463 : vector<1x352xf32>
    %c13 = arith.constant 13 : index
    %465 = memref.load %arg2[%c13] : memref<98xf32, #tpu.memory_space<smem>>
    %466 = vector.broadcast %465 : f32 to vector<1x352xf32>
    %467 = arith.mulf %466, %460 : vector<1x352xf32>
    %468 = arith.addf %430, %467 : vector<1x352xf32>
    %c20 = arith.constant 20 : index
    %469 = memref.load %arg2[%c20] : memref<98xf32, #tpu.memory_space<smem>>
    %470 = vector.broadcast %469 : f32 to vector<1x352xf32>
    %471 = arith.mulf %470, %460 : vector<1x352xf32>
    %472 = arith.addf %434, %471 : vector<1x352xf32>
    %c27 = arith.constant 27 : index
    %473 = memref.load %arg2[%c27] : memref<98xf32, #tpu.memory_space<smem>>
    %474 = vector.broadcast %473 : f32 to vector<1x352xf32>
    %475 = arith.mulf %474, %460 : vector<1x352xf32>
    %476 = arith.addf %438, %475 : vector<1x352xf32>
    %c34 = arith.constant 34 : index
    %477 = memref.load %arg2[%c34] : memref<98xf32, #tpu.memory_space<smem>>
    %478 = vector.broadcast %477 : f32 to vector<1x352xf32>
    %479 = arith.mulf %478, %460 : vector<1x352xf32>
    %480 = arith.addf %442, %479 : vector<1x352xf32>
    %c41 = arith.constant 41 : index
    %481 = memref.load %arg2[%c41] : memref<98xf32, #tpu.memory_space<smem>>
    %482 = vector.broadcast %481 : f32 to vector<1x352xf32>
    %483 = arith.mulf %482, %460 : vector<1x352xf32>
    %484 = arith.addf %446, %483 : vector<1x352xf32>
    %c48 = arith.constant 48 : index
    %485 = memref.load %arg2[%c48] : memref<98xf32, #tpu.memory_space<smem>>
    %486 = vector.broadcast %485 : f32 to vector<1x352xf32>
    %487 = arith.mulf %486, %460 : vector<1x352xf32>
    %488 = arith.addf %450, %487 : vector<1x352xf32>
    %c1_76 = arith.constant 1 : index
    %c83_77 = arith.constant 83 : index
    %489 = vector.load %arg5[%c1_76, %c83_77] : memref<2x512xf32, #tpu.memory_space<vmem>>, vector<1x352xf32>
    %cst_78 = arith.constant 0.000000e+00 : f32
    %490 = vector.broadcast %cst_78 : f32 to vector<1x352xf32>
    %491 = arith.select %457, %489, %490 : vector<1x352xi1>, vector<1x352xf32>
    %c55 = arith.constant 55 : index
    %492 = memref.load %arg2[%c55] : memref<98xf32, #tpu.memory_space<smem>>
    %493 = vector.broadcast %492 : f32 to vector<1x352xf32>
    %494 = arith.mulf %493, %491 : vector<1x352xf32>
    %495 = arith.addf %464, %494 : vector<1x352xf32>
    %c62 = arith.constant 62 : index
    %496 = memref.load %arg2[%c62] : memref<98xf32, #tpu.memory_space<smem>>
    %497 = vector.broadcast %496 : f32 to vector<1x352xf32>
    %498 = arith.mulf %497, %491 : vector<1x352xf32>
    %499 = arith.addf %468, %498 : vector<1x352xf32>
    %c69 = arith.constant 69 : index
    %500 = memref.load %arg2[%c69] : memref<98xf32, #tpu.memory_space<smem>>
    %501 = vector.broadcast %500 : f32 to vector<1x352xf32>
    %502 = arith.mulf %501, %491 : vector<1x352xf32>
    %503 = arith.addf %472, %502 : vector<1x352xf32>
    %c76 = arith.constant 76 : index
    %504 = memref.load %arg2[%c76] : memref<98xf32, #tpu.memory_space<smem>>
    %505 = vector.broadcast %504 : f32 to vector<1x352xf32>
    %506 = arith.mulf %505, %491 : vector<1x352xf32>
    %507 = arith.addf %476, %506 : vector<1x352xf32>
    %c83_79 = arith.constant 83 : index
    %508 = memref.load %arg2[%c83_79] : memref<98xf32, #tpu.memory_space<smem>>
    %509 = vector.broadcast %508 : f32 to vector<1x352xf32>
    %510 = arith.mulf %509, %491 : vector<1x352xf32>
    %511 = arith.addf %480, %510 : vector<1x352xf32>
    %c90 = arith.constant 90 : index
    %512 = memref.load %arg2[%c90] : memref<98xf32, #tpu.memory_space<smem>>
    %513 = vector.broadcast %512 : f32 to vector<1x352xf32>
    %514 = arith.mulf %513, %491 : vector<1x352xf32>
    %515 = arith.addf %484, %514 : vector<1x352xf32>
    %c97 = arith.constant 97 : index
    %516 = memref.load %arg2[%c97] : memref<98xf32, #tpu.memory_space<smem>>
    %517 = vector.broadcast %516 : f32 to vector<1x352xf32>
    %518 = arith.mulf %517, %491 : vector<1x352xf32>
    %519 = arith.addf %488, %518 : vector<1x352xf32>
    %cst_80 = arith.constant 0.000000e+00 : f32
    %520 = vector.broadcast %cst_80 : f32 to vector<1x256xf32>
    %521 = vector.extract_strided_slice %495 {offsets = [0, 0], sizes = [1, 256], strides = [1, 1]} : vector<1x352xf32> to vector<1x256xf32>
    %522 = arith.addf %520, %521 : vector<1x256xf32>
    %523 = vector.extract_strided_slice %499 {offsets = [0, 16], sizes = [1, 256], strides = [1, 1]} : vector<1x352xf32> to vector<1x256xf32>
    %524 = arith.addf %522, %523 : vector<1x256xf32>
    %525 = vector.extract_strided_slice %503 {offsets = [0, 32], sizes = [1, 256], strides = [1, 1]} : vector<1x352xf32> to vector<1x256xf32>
    %526 = arith.addf %524, %525 : vector<1x256xf32>
    %527 = vector.extract_strided_slice %507 {offsets = [0, 48], sizes = [1, 256], strides = [1, 1]} : vector<1x352xf32> to vector<1x256xf32>
    %528 = arith.addf %526, %527 : vector<1x256xf32>
    %529 = vector.extract_strided_slice %511 {offsets = [0, 64], sizes = [1, 256], strides = [1, 1]} : vector<1x352xf32> to vector<1x256xf32>
    %530 = arith.addf %528, %529 : vector<1x256xf32>
    %531 = vector.extract_strided_slice %515 {offsets = [0, 80], sizes = [1, 256], strides = [1, 1]} : vector<1x352xf32> to vector<1x256xf32>
    %532 = arith.addf %530, %531 : vector<1x256xf32>
    %533 = vector.extract_strided_slice %519 {offsets = [0, 96], sizes = [1, 256], strides = [1, 1]} : vector<1x352xf32> to vector<1x256xf32>
    %534 = arith.addf %532, %533 : vector<1x256xf32>
    %c0_81 = arith.constant 0 : index
    %535 = memref.load %arg3[%c0_81] : memref<1xf32, #tpu.memory_space<smem>>
    %536 = vector.broadcast %535 : f32 to vector<1x256xf32>
    %537 = arith.addf %534, %536 : vector<1x256xf32>
    %538 = arith.negf %537 : vector<1x256xf32>
    %539 = math.exp %538 : vector<1x256xf32>
    %cst_82 = arith.constant 1.000000e+00 : f32
    %540 = vector.broadcast %cst_82 : f32 to vector<1x256xf32>
    %541 = arith.addf %540, %539 : vector<1x256xf32>
    %542 = arith.divf %540, %541 : vector<1x256xf32>
    %c0_83 = arith.constant 0 : index
    %c0_84 = arith.constant 0 : index
    %c0_85 = arith.constant 0 : index
    %543 = vector.load %arg1[%c0_83, %c0_84, %c0_85] : memref<1x4x256xf32, #tpu.memory_space<vmem>>, vector<1x4x256xf32>
    %544 = vector.shape_cast %543 : vector<1x4x256xf32> to vector<4x256xf32>
    %545 = vector.broadcast %542 : vector<1x256xf32> to vector<4x256xf32>
    %546 = arith.mulf %544, %545 : vector<4x256xf32>
    %c0_86 = arith.constant 0 : index
    %c0_87 = arith.constant 0 : index
    %c0_88 = arith.constant 0 : index
    %547 = vector.load %arg4[%c0_86, %c0_87, %c0_88] : memref<1x4x256xf32, #tpu.memory_space<vmem>>, vector<1x4x256xf32>
    %548 = vector.shape_cast %547 : vector<1x4x256xf32> to vector<4x256xf32>
    %549 = vector.shape_cast %546 : vector<4x256xf32> to vector<1x4x256xf32>
    tpu.vector_store %arg4[%c0_86, %c0_87, %c0_88], %549 {strides = array<i32>} : memref<1x4x256xf32, #tpu.memory_space<vmem>>, vector<1x4x256xf32>,
    return
  }
  func.func @transform_0(%arg0: i32) -> (i32, i32, i32) {
    %c0_i32 = arith.constant 0 : i32
    %c0_i32_0 = arith.constant 0 : i32
    %c0_i32_1 = arith.constant 0 : i32
    return %arg0, %c0_i32, %c0_i32_0 : i32, i32, i32
  }
  func.func @transform_1(%arg0: i32) -> i32 {
    %c0_i32 = arith.constant 0 : i32
    %c0_i32_0 = arith.constant 0 : i32
    return %c0_i32 : i32
  }
  func.func @transform_2(%arg0: i32) -> i32 {
    %c0_i32 = arith.constant 0 : i32
    %c0_i32_0 = arith.constant 0 : i32
    return %c0_i32 : i32
  }
  func.func @transform_3(%arg0: i32) -> (i32, i32, i32) {
    %c0_i32 = arith.constant 0 : i32
    %c0_i32_0 = arith.constant 0 : i32
    %c0_i32_1 = arith.constant 0 : i32
    return %arg0, %c0_i32, %c0_i32_0 : i32, i32, i32
  }
}

</mosaic_0001>

<llo_original>
// kernel: tpu_custom_call.1
$region0: #{tpu_custom_call.1}
  #allocation0 [shape = 'u32[]', space=smem, size = 0x4, offset = 0x4, fixed_abs, tag = 'smem constant byte address 0x4 - core index']
  #allocation1 [shape = 'u32[144,128]{1,0:T(1,128)}', space=vmem, size = 0x12000, scoped, tag = 'internal scratch']
  #allocation2 [shape = 'f32[2,512]{1,0:T(2,128)}', space=vmem, size = 0x1000, scoped, tag = 'scratch operand']
  #allocation3 [shape = 'f32[1]{0:T(128)S(6)}', space=smem, size = 0x200, scoped, tag = 'scoped memory for tpu_custom_call.1']
  %s0 = inlined_call_operand.hbm [shape: f32[2,4,256], index: 0, kind: input, shape index: {}, may-alias: {0,3}]
  %s1 = inlined_call_operand.vmem [shape: f32[98], index: 1, kind: input, shape index: {}]
  %s2 = inlined_call_operand.<no memory space> [shape: f32[1], index: 2, kind: input, shape index: {}]
  %s3 = inlined_call_operand.hbm [shape: f32[2,4,256], index: 3, kind: output, shape index: {}, may-alias: {0,3}]
  %s4 = sld [smem:[#allocation0]]
  $region53: #{tpu_custom_call.1} parent=0
    _
  %s6 = ssub.s32 1, %s4
  %s7 = scalar_select 0, %s6, %s4
  %8 = sst [smem:[#allocation3]] %s2
  $region1: #{tpu_custom_call.1} parent=0
    #allocation4 [shape = 'u8[8192]{0}', space=vmem, size = 0x2000, scoped, tag = 'input window, operand 0']
    #allocation5 [shape = 's32[2]{0}', space=sflag, size = 0x8, scoped, tag = 'scoped memory for tpu_custom_call.1']
    #allocation6 [shape = 's32[2]{0}', space=sflag, size = 0x8, scoped, tag = 'scoped memory for tpu_custom_call.1']
    #allocation7 [shape = 's32[2]{0}', space=sflag, size = 0x8, scoped, tag = 'scoped memory for tpu_custom_call.1']
    #allocation8 [shape = 'u8[512]{0}', space=smem, size = 0x200, scoped, tag = 'input window, operand 1, single buffered']
    #allocation9 [shape = 'u8[8192]{0}', space=vmem, size = 0x2000, scoped, tag = 'output window, operand 0']
    %9 = vsyncpa [#allocation5], 0
    %s10 = scalar_lea.sflag [#allocation5], 1
    %11 = vsyncpa %s10, 0
    %12 = vsyncpa [#allocation7], 0
    %13 = vsyncpa [#allocation6], 0
    %s14 = scalar_lea.sflag [#allocation6], 1
    %15 = vsyncpa %s14, 0
    loop: start=0, step=1, limit=4
    $region2: #{tpu_custom_call.1} parent=1 // loop_pre_header
      _
    $region3: #{tpu_custom_call.1} parent=1 // loop_header
      %s17 = sphi 0, %s21
      %p18 = scmp.ge.s32.totalorder %s17, 4
      %s27 = sphi 0, %s29
      %s30 = sphi 0, %s27
      %s31 = sphi 0, %s30
      %s47 = sphi 0, %s31
      %s51 = sphi 0, %s51
      %s53 = sphi 0, %s51
      %s54 = sphi 0, %s53
      %s68 = sphi 0, %s54
      %s72 = sphi 0, %s72
      %s74 = sphi 0, %s72
      %s75 = sphi 0, %s74
      %s89 = sphi 0, %s75
      %s95 = sphi 0, %s97
      %s98 = sphi 0, %s95
      %s99 = sphi 0, %s98
      %s115 = sphi 0, %s99
    $region4: #{tpu_custom_call.1} parent=1 // loop_header_branch
      %20 = sbr.rel (%p18) target = $region8
    $region5: #{tpu_custom_call.1} parent=1 // loop_body
      %s22 = ssub.s32 %s17, 1
      %s23 = ssub.s32 %s17, 2
      %s24 = sadd.s32 %s17, 1
      %s25 = ssub.s32 %s17, %s24
      %p26 = scmp.eq.s32.totalorder %s25, 0
      %s28 = sadd.s32 %s27, 1
      %s29 = scalar_select %p26, %s27, %s28
      %p32 = pneg %p26
      %p33 = scmp.eq.s32.totalorder %s17, 1
      %p34 = por %p32, %p33
      %p35 = scmp.ne.s32.totalorder %s27, %s30
      %p36 = scmp.eq.s32.totalorder %s17, 0
      %p37 = por %p35, %p36
      %p38 = scmp.ne.s32.totalorder %s27, %s30
      %p39 = scmp.eq.s32.totalorder %s22, 1
      %p40 = por %p38, %p39
      %p41 = scmp.ne.s32.totalorder %s30, %s31
      %p42 = scmp.eq.s32.totalorder %s22, 0
      %p43 = por %p41, %p42
      %p44 = scmp.ne.s32.totalorder %s30, %s31
      %p45 = scmp.eq.s32.totalorder %s23, 1
      %p46 = por %p44, %p45
      %p48 = scmp.ne.s32.totalorder %s31, %s47
      %p49 = scmp.eq.s32.totalorder %s23, 0
      %p50 = por %p48, %p49
      %s52 = sadd.s32 %s51, 1
      %p55 = scmp.eq.s32.totalorder %s17, 1
      %p56 = scmp.ne.s32.totalorder %s51, %s53
      %p57 = scmp.eq.s32.totalorder %s17, 0
      %p58 = por %p56, %p57
      %p59 = scmp.ne.s32.totalorder %s51, %s53
      %p60 = scmp.eq.s32.totalorder %s22, 1
      %p61 = por %p59, %p60
      %p62 = scmp.ne.s32.totalorder %s53, %s54
      %p63 = scmp.eq.s32.totalorder %s22, 0
      %p64 = por %p62, %p63
      %p65 = scmp.ne.s32.totalorder %s53, %s54
      %p66 = scmp.eq.s32.totalorder %s23, 1
      %p67 = por %p65, %p66
      %p69 = scmp.ne.s32.totalorder %s54, %s68
      %p70 = scmp.eq.s32.totalorder %s23, 0
      %p71 = por %p69, %p70
      %s73 = sadd.s32 %s72, 1
      %p76 = scmp.eq.s32.totalorder %s17, 1
      %p77 = scmp.ne.s32.totalorder %s72, %s74
      %p78 = scmp.eq.s32.totalorder %s17, 0
      %p79 = por %p77, %p78
      %p80 = scmp.ne.s32.totalorder %s72, %s74
      %p81 = scmp.eq.s32.totalorder %s22, 1
      %p82 = por %p80, %p81
      %p83 = scmp.ne.s32.totalorder %s74, %s75
      %p84 = scmp.eq.s32.totalorder %s22, 0
      %p85 = por %p83, %p84
      %p86 = scmp.ne.s32.totalorder %s74, %s75
      %p87 = scmp.eq.s32.totalorder %s23, 1
      %p88 = por %p86, %p87
      %p90 = scmp.ne.s32.totalorder %s75, %s89
      %p91 = scmp.eq.s32.totalorder %s23, 0
      %p92 = por %p90, %p91
      %s93 = ssub.s32 %s17, %s24
      %p94 = scmp.eq.s32.totalorder %s93, 0
      %s96 = sadd.s32 %s95, 1
      %s97 = scalar_select %p94, %s95, %s96
      %p100 = pneg %p94
      %p101 = scmp.eq.s32.totalorder %s17, 1
      %p102 = por %p100, %p101
      %p103 = scmp.ne.s32.totalorder %s95, %s98
      %p104 = scmp.eq.s32.totalorder %s17, 0
      %p105 = por %p103, %p104
      %p106 = scmp.ne.s32.totalorder %s95, %s98
      %p107 = scmp.eq.s32.totalorder %s22, 1
      %p108 = por %p106, %p107
      %p109 = scmp.ne.s32.totalorder %s98, %s99
      %p110 = scmp.eq.s32.totalorder %s22, 0
      %p111 = por %p109, %p110
      %p112 = scmp.ne.s32.totalorder %s98, %s99
      %p113 = scmp.eq.s32.totalorder %s23, 1
      %p114 = por %p112, %p113
      %p116 = scmp.ne.s32.totalorder %s99, %s115
      %p117 = scmp.eq.s32.totalorder %s23, 0
      %p118 = por %p116, %p117
      %p119 = scmp.le.s32.totalorder 1, %s17
      %p120 = scmp.lt.s32.totalorder %s17, 3
      %p121 = pnand %p119, %p120
      %p122 = pneg %p121
      // Predicated region
      $region9: #{tpu_custom_call.1} parent=5 // pred_check
        _
      $region10: #{tpu_custom_call.1} parent=5 // pred_check_branch
        %124 = sbr.rel (%p121) target = $region12
      $region11: #{tpu_custom_call.1} parent=5 // pred_region
        %s125 = ssub.s32 %s17, 1
        // Predicated region
        $region13: #{tpu_custom_call.1} parent=11 // pred_check
          %p126 = pneg %p64
        $region14: #{tpu_custom_call.1} parent=11 // pred_check_branch
          %128 = sbr.rel (%p126) target = $region16
        $region15: #{tpu_custom_call.1} parent=11 // pred_region
          %s130 = ssub.s32 16, 16
          %131 = vsyncadd [#allocation7], %s130
          %s133 = sshll.u32 %s1, 4
          %s134 = int_to_ptr.vmem [resolvable:$true] %s133
          %136 = dma.vmem_to_smem %s134, 16, [#allocation8], [#allocation7]
        $region16: #{tpu_custom_call.1} parent=11 // pred_fallthru
          _
        // Predicated region
        $region17: #{tpu_custom_call.1} parent=11 // pred_check
          %p137 = pneg %p85
        $region18: #{tpu_custom_call.1} parent=11 // pred_check_branch
          %139 = sbr.rel (%p137) target = $region20
        $region19: #{tpu_custom_call.1} parent=11 // pred_region
          _
        $region20: #{tpu_custom_call.1} parent=11 // pred_fallthru
          _
      $region12: #{tpu_custom_call.1} parent=5 // pred_fallthru
        _
      %p140 = scmp.lt.s32.totalorder %s17, 2
      // Predicated region
      $region21: #{tpu_custom_call.1} parent=5 // pred_check
        %p141 = pneg %p140
      $region22: #{tpu_custom_call.1} parent=5 // pred_check_branch
        %143 = sbr.rel (%p141) target = $region24
      $region23: #{tpu_custom_call.1} parent=5 // pred_region
        // Predicated region
        $region25: #{tpu_custom_call.1} parent=23 // pred_check
          %p144 = pneg %p37
        $region26: #{tpu_custom_call.1} parent=23 // pred_check_branch
          %146 = sbr.rel (%p144) target = $region28
        $region27: #{tpu_custom_call.1} parent=23 // pred_region
          %s147 = sand.u32 %s27, 1
          %s148 = scalar_lea.sflag [#allocation5], %s147
          %s149 = sand.u32 %s27, 1
          %s150 = smul.addr %s149, 8
          %s151 = scalar_lea.vmem [#allocation4], %s150
          %s153 = ssub.s32 128, 128
          %154 = vsyncadd %s148, %s153
          %s155 = smul.addr %s17, 2
          %s156 = smul.addr %s155, 64
          %s157 = scalar_lea.hbm %s0, %s156
          %s159 = sshll.u32 %s151, 4
          %s160 = int_to_ptr.vmem [resolvable:$true] %s159
          %162 = dma.hbm_to_vmem [thread:$0]  %s157, 128, %s160, %s148
        $region28: #{tpu_custom_call.1} parent=23 // pred_fallthru
          _
      $region24: #{tpu_custom_call.1} parent=5 // pred_fallthru
        _
      %p163 = scmp.le.s32.totalorder 1, %s17
      %p164 = scmp.lt.s32.totalorder %s17, 3
      %p165 = pnand %p163, %p164
      %p166 = pneg %p165
      // Predicated region
      $region29: #{tpu_custom_call.1} parent=5 // pred_check
        _
      $region30: #{tpu_custom_call.1} parent=5 // pred_check_branch
        %168 = sbr.rel (%p165) target = $region32
      $region31: #{tpu_custom_call.1} parent=5 // pred_region
        %s169 = ssub.s32 %s17, 1
        %s170 = sand.u32 %s30, 1
        %s171 = scalar_lea.sflag [#allocation5], %s170
        %s172 = sand.u32 %s30, 1
        %s173 = smul.addr %s172, 8
        %s174 = scalar_lea.vmem [#allocation4], %s173
        // Predicated region
        $region33: #{tpu_custom_call.1} parent=31 // pred_check
          %p175 = pneg %p43
        $region34: #{tpu_custom_call.1} parent=31 // pred_check_branch
          %177 = sbr.rel (%p175) target = $region36
        $region35: #{tpu_custom_call.1} parent=31 // pred_region
          %178 = dma.done %s171, 128
        $region36: #{tpu_custom_call.1} parent=31 // pred_fallthru
          _
        // Predicated region
        $region37: #{tpu_custom_call.1} parent=31 // pred_check
          %p179 = pneg %p64
        $region38: #{tpu_custom_call.1} parent=31 // pred_check_branch
          %181 = sbr.rel (%p179) target = $region40
        $region39: #{tpu_custom_call.1} parent=31 // pred_region
          %182 = dma.done [#allocation7], 16
        $region40: #{tpu_custom_call.1} parent=31 // pred_fallthru
          _
        %183 = sfence
        %s184 = sand.u32 %s30, 1
        %s185 = scalar_lea.sflag [#allocation5], %s184
        %s186 = sand.u32 %s30, 1
        %s187 = smul.addr %s186, 8
        %s188 = scalar_lea.vmem [#allocation4], %s187
        %p189 = pneg %p43
        %p190 = pneg %p40
        %p191 = pneg %p64
        %p192 = pneg %p61
        %p193 = pneg %p85
        %p194 = pneg %p82
        %p195 = pneg %p111
        %p196 = pneg %p108
        %s197 = sand.u32 %s98, 1
        %s198 = scalar_lea.sflag [#allocation6], %s197
        %s199 = sand.u32 %s98, 1
        %s200 = smul.addr %s199, 8
        %s201 = scalar_lea.vmem [#allocation9], %s200
        %v202 = vld [vmem:[%s174] sm:$0xff]
        %v204 = vcombine.high %v202, %v202
        %vm206 = vcmask 1043456
        %v207 = vsel %vm206, %v202, -inf
        %v208 = vrot.slane %v207, 4
        %v209 = vmax.f32 %v207, %v208
        %v210 = vrot.slane %v209, 2
        %v211 = vmax.f32 %v209, %v210
        %v212 = vrot.slane %v211, 1
        %v213 = vmax.f32 %v211, %v212
        %v214 = vsel %vm206, %v204, -inf
        %v215 = vrot.slane %v214, 4
        %v216 = vmax.f32 %v214, %v215
        %v217 = vrot.slane %v216, 2
        %v218 = vmax.f32 %v216, %v217
        %v219 = vrot.slane %v218, 1
        %v220 = vmax.f32 %v218, %v219
        %v221 = vsel %vm206, %v202, 0.0
        %v222 = vrot.slane %v221, 4
        %v223 = vadd.f32 %v221, %v222
        %v224 = vrot.slane %v223, 2
        %v225 = vadd.f32 %v223, %v224
        %v226 = vrot.slane %v225, 1
        %v227 = vadd.f32 %v225, %v226
        %v228 = vsel %vm206, %v204, 0.0
        %v229 = vrot.slane %v228, 4
        %v230 = vadd.f32 %v228, %v229
        %v231 = vrot.slane %v230, 2
        %v232 = vadd.f32 %v230, %v231
        %v233 = vrot.slane %v232, 1
        %v234 = vadd.f32 %v232, %v233
        %v235 = vmul.f32 %v227, 0.25
        %v236 = vmul.f32 %v234, 0.25
        %237 = vst [vmem:[#allocation2] sm:$0x3] 0.0
        %238 = vst [vmem:[#allocation2 + $0x6] sm:$0x3] 0.0
        %v241 = vcombine.low %v213, %v220
        %v243 = vunpack.c.l.s4 1966171168
        %v244 = vunpack.c.0.s8 %v243
        %v245 = vlaneseq
        %v246 = vshrl.u32 %v245, 7
        %v247 = vsub.s32 %v244, %v246
        %v248 = vrot.slane %v241, %v247
        %v250 = vunpack.c.l.s4 1966171168
        %v251 = vunpack.c.0.s8 %v250
        %v252 = vlaneseq
        %v253 = vshrl.u32 %v252, 7
        %v254 = vsub.s32 %v251, %v253
        %v255 = vrot.slane %v248, %v254
        %v257 = vlaneseq
        %vm258 = vcmp.ge.s32.totalorder %v257, 0
        %vm259 = vcmp.lt.s32.totalorder %v257, 256
        %vm260 = vmand %vm258, %vm259
        %s261 = scalar_lea.vmem [#allocation2], 2
        %262 = vst.msk [vmem:[%s261] ss:$2 sm:$0x3] %vm260, %v255
        %v265 = vcombine.low %v235, %v236
        %v267 = vunpack.c.l.s4 1966171168
        %v268 = vunpack.c.0.s8 %v267
        %v269 = vlaneseq
        %v270 = vshrl.u32 %v269, 7
        %v271 = vsub.s32 %v268, %v270
        %v272 = vrot.slane %v265, %v271
        %v274 = vunpack.c.l.s4 1966171168
        %v275 = vunpack.c.0.s8 %v274
        %v276 = vlaneseq
        %v277 = vshrl.u32 %v276, 7
        %v278 = vsub.s32 %v275, %v277
        %v279 = vrot.slane %v272, %v278
        %s281 = scalar_lea.vmem [#allocation2], 3
        %282 = vst.msk [vmem:[%s281] ss:$2 sm:$0x3] %vm260, %v279
        %v283 = vlaneseq
        %v284 = vand.u32 %v283, 127
        %v285 = vadd.s32 %v284, 128
        %v286 = vadd.s32 %v284, 256
        %vm287 = vcmp.lt.s32.totalorder %v284, 0
        %v288 = vsub.s32 0, %v284
        %v289 = vsel %vm287, %v288, %v284
        %v290 = vshrl.u32 %v289, 4
        %v291 = vand.u32 %v289, 15
        %v292 = vsub.s32 0, %v291
        %v293 = vsel %vm287, %v292, %v291
        %vm294 = vcmp.lt.s32.totalorder %v285, 0
        %v295 = vsub.s32 0, %v285
        %v296 = vsel %vm294, %v295, %v285
        %v297 = vshrl.u32 %v296, 4
        %v298 = vand.u32 %v296, 15
        %v299 = vsub.s32 0, %v298
        %v300 = vsel %vm294, %v299, %v298
        %vm301 = vcmp.lt.s32.totalorder %v286, 0
        %v302 = vsub.s32 0, %v286
        %v303 = vsel %vm301, %v302, %v286
        %v304 = vshrl.u32 %v303, 4
        %v305 = vand.u32 %v303, 15
        %v306 = vsub.s32 0, %v305
        %v307 = vsel %vm301, %v306, %v305
        %vm308 = vcmp.ne.s32.totalorder %v293, 0
        %vm309 = vcmp.ne.s32.totalorder %v300, 0
        %vm310 = vcmp.ne.s32.totalorder %v307, 0
        %vm311 = vcmp.lt.s32.totalorder %v293, 0
        %vm312 = vcmp.lt.s32.totalorder %v300, 0
        %vm313 = vcmp.lt.s32.totalorder %v307, 0
        %vm314 = vmand %vm311, %vm308
        %vm315 = vmand %vm312, %vm309
        %vm316 = vmand %vm313, %vm310
        %v317 = vadd.s32 %v293, 16
        %v318 = vadd.s32 %v300, 16
        %v319 = vadd.s32 %v307, 16
        %v320 = vsel %vm314, %v317, %v293
        %v321 = vsel %vm315, %v318, %v300
        %v322 = vsel %vm316, %v319, %v307
        %v323 = vadd.s32 %v320, 4294967293
        %v324 = vadd.s32 %v321, 4294967293
        %v325 = vadd.s32 %v322, 4294967293
        %vm326 = vcmp.ge.s32.totalorder %v323, 0
        %vm327 = vcmp.ge.s32.totalorder %v324, 0
        %vm328 = vcmp.ge.s32.totalorder %v325, 0
        %vm329 = vcmp.lt.s32.totalorder %v323, 16
        %vm330 = vcmp.lt.s32.totalorder %v324, 16
        %vm331 = vcmp.lt.s32.totalorder %v325, 16
        %vm332 = vmand %vm326, %vm329
        %vm333 = vmand %vm327, %vm330
        %vm334 = vmand %vm328, %vm331
        %v335 = vld [vmem:[#allocation2] ss:$2 sm:$0xf]
        %v337 = vlaneseq
        %v338 = vshrl.u32 %v337, 7
        %v339 = vsub.s32 0, %v338
        %v340 = vrot.slane %v335, %v339
        %v341 = vlaneseq
        %v342 = vshrl.u32 %v341, 7
        %v343 = vsub.s32 1, %v342
        %v344 = vrot.slane %v335, %v343
        %v345 = vlaneseq
        %v346 = vshrl.u32 %v345, 7
        %v347 = vsub.s32 2, %v346
        %v348 = vrot.slane %v335, %v347
        %v349 = vlaneseq
        %v350 = vshrl.u32 %v349, 7
        %v351 = vsub.s32 3, %v350
        %v352 = vrot.slane %v335, %v351
        %353 = vrot.lane.b32.xlu0 %v340, 51
        %v354 = vpop.permute.xlu0 %353
        %355 = vrot.lane.b32.xlu0 %v344, 51
        %v356 = vpop.permute.xlu0 %355
        %357 = vrot.lane.b32.xlu0 %v348, 51
        %v358 = vpop.permute.xlu0 %357
        %359 = vrot.lane.b32.xlu0 %v352, 51
        %v360 = vpop.permute.xlu0 %359
        %vm361 = vcmask 416768
        %v362 = vsel %vm361, %v354, %v356
        %v363 = vsel %vm361, %v356, %v358
        %v364 = vsel %vm361, %v358, %v360
        %v368 = vsel %vm332, %v362, 0.0
        %v369 = vsel %vm333, %v363, 0.0
        %v370 = vsel %vm334, %v364, 0.0
        %s371 = sld [smem:[#allocation8]]
        %v372 = vstv %s371
        %v373 = vmul.f32 %v372, %v368
        %v374 = vmul.f32 %v372, %v369
        %v375 = vadd.f32 %v373, 0.0
        %v376 = vadd.f32 %v374, 0.0
        %s377 = sld [smem:[#allocation8 + $0x7]]
        %v378 = vstv %s377
        %v379 = vmul.f32 %v378, %v368
        %v380 = vmul.f32 %v378, %v369
        %v381 = vmul.f32 %v378, %v370
        %v382 = vadd.f32 %v379, 0.0
        %v383 = vadd.f32 %v380, 0.0
        %v384 = vadd.f32 %v381, 0.0
        %s385 = sld [smem:[#allocation8 + $0xe]]
        %v386 = vstv %s385
        %v387 = vmul.f32 %v386, %v368
        %v388 = vmul.f32 %v386, %v369
        %v389 = vmul.f32 %v386, %v370
        %v390 = vadd.f32 %v387, 0.0
        %v391 = vadd.f32 %v388, 0.0
        %v392 = vadd.f32 %v389, 0.0
        %s393 = sld [smem:[#allocation8 + $0x15]]
        %v394 = vstv %s393
        %v395 = vmul.f32 %v394, %v368
        %v396 = vmul.f32 %v394, %v369
        %v397 = vmul.f32 %v394, %v370
        %v398 = vadd.f32 %v395, 0.0
        %v399 = vadd.f32 %v396, 0.0
        %v400 = vadd.f32 %v397, 0.0
        %s401 = sld [smem:[#allocation8 + $0x1c]]
        %v402 = vstv %s401
        %v403 = vmul.f32 %v402, %v368
        %v404 = vmul.f32 %v402, %v369
        %v405 = vmul.f32 %v402, %v370
        %v406 = vadd.f32 %v403, 0.0
        %v407 = vadd.f32 %v404, 0.0
        %v408 = vadd.f32 %v405, 0.0
        %s409 = sld [smem:[#allocation8 + $0x23]]
        %v410 = vstv %s409
        %v411 = vmul.f32 %v410, %v368
        %v412 = vmul.f32 %v410, %v369
        %v413 = vmul.f32 %v410, %v370
        %v414 = vadd.f32 %v411, 0.0
        %v415 = vadd.f32 %v412, 0.0
        %v416 = vadd.f32 %v413, 0.0
        %s417 = sld [smem:[#allocation8 + $0x2a]]
        %v418 = vstv %s417
        %v419 = vmul.f32 %v418, %v368
        %v420 = vmul.f32 %v418, %v369
        %v421 = vmul.f32 %v418, %v370
        %v422 = vadd.f32 %v419, 0.0
        %v423 = vadd.f32 %v420, 0.0
        %v424 = vadd.f32 %v421, 0.0
        %s425 = scalar_lea.vmem [#allocation2], 1
        %v426 = vld [vmem:[%s425] ss:$2 sm:$0xf]
        %v428 = vlaneseq
        %v429 = vshrl.u32 %v428, 7
        %v430 = vsub.s32 0, %v429
        %v431 = vrot.slane %v426, %v430
        %v432 = vlaneseq
        %v433 = vshrl.u32 %v432, 7
        %v434 = vsub.s32 1, %v433
        %v435 = vrot.slane %v426, %v434
        %v436 = vlaneseq
        %v437 = vshrl.u32 %v436, 7
        %v438 = vsub.s32 2, %v437
        %v439 = vrot.slane %v426, %v438
        %v440 = vlaneseq
        %v441 = vshrl.u32 %v440, 7
        %v442 = vsub.s32 3, %v441
        %v443 = vrot.slane %v426, %v442
        %444 = vrot.lane.b32.xlu0 %v431, 51
        %v445 = vpop.permute.xlu0 %444
        %446 = vrot.lane.b32.xlu0 %v435, 51
        %v447 = vpop.permute.xlu0 %446
        %448 = vrot.lane.b32.xlu0 %v439, 51
        %v449 = vpop.permute.xlu0 %448
        %450 = vrot.lane.b32.xlu0 %v443, 51
        %v451 = vpop.permute.xlu0 %450
        %v452 = vsel %vm361, %v445, %v447
        %v453 = vsel %vm361, %v447, %v449
        %v454 = vsel %vm361, %v449, %v451
        %v458 = vsel %vm332, %v452, 0.0
        %v459 = vsel %vm333, %v453, 0.0
        %v460 = vsel %vm334, %v454, 0.0
        %s461 = sld [smem:[#allocation8 + $0x31]]
        %v462 = vstv %s461
        %v463 = vmul.f32 %v462, %v458
        %v464 = vmul.f32 %v462, %v459
        %v465 = vadd.f32 %v375, %v463
        %v466 = vadd.f32 %v376, %v464
        %s467 = sld [smem:[#allocation8 + $0x38]]
        %v468 = vstv %s467
        %v469 = vmul.f32 %v468, %v458
        %v470 = vmul.f32 %v468, %v459
        %v471 = vmul.f32 %v468, %v460
        %v472 = vadd.f32 %v382, %v469
        %v473 = vadd.f32 %v383, %v470
        %v474 = vadd.f32 %v384, %v471
        %s475 = sld [smem:[#allocation8 + $0x3f]]
        %v476 = vstv %s475
        %v477 = vmul.f32 %v476, %v458
        %v478 = vmul.f32 %v476, %v459
        %v479 = vmul.f32 %v476, %v460
        %v480 = vadd.f32 %v390, %v477
        %v481 = vadd.f32 %v391, %v478
        %v482 = vadd.f32 %v392, %v479
        %s483 = sld [smem:[#allocation8 + $0x46]]
        %v484 = vstv %s483
        %v485 = vmul.f32 %v484, %v458
        %v486 = vmul.f32 %v484, %v459
        %v487 = vmul.f32 %v484, %v460
        %v488 = vadd.f32 %v398, %v485
        %v489 = vadd.f32 %v399, %v486
        %v490 = vadd.f32 %v400, %v487
        %s491 = sld [smem:[#allocation8 + $0x4d]]
        %v492 = vstv %s491
        %v493 = vmul.f32 %v492, %v458
        %v494 = vmul.f32 %v492, %v459
        %v495 = vmul.f32 %v492, %v460
        %v496 = vadd.f32 %v406, %v493
        %v497 = vadd.f32 %v407, %v494
        %v498 = vadd.f32 %v408, %v495
        %s499 = sld [smem:[#allocation8 + $0x54]]
        %v500 = vstv %s499
        %v501 = vmul.f32 %v500, %v458
        %v502 = vmul.f32 %v500, %v459
        %v503 = vmul.f32 %v500, %v460
        %v504 = vadd.f32 %v414, %v501
        %v505 = vadd.f32 %v415, %v502
        %v506 = vadd.f32 %v416, %v503
        %s507 = sld [smem:[#allocation8 + $0x5b]]
        %v508 = vstv %s507
        %v509 = vmul.f32 %v508, %v458
        %v510 = vmul.f32 %v508, %v459
        %v511 = vmul.f32 %v508, %v460
        %v512 = vadd.f32 %v422, %v509
        %v513 = vadd.f32 %v423, %v510
        %v514 = vadd.f32 %v424, %v511
        %v515 = vadd.s32 %v320, 4294967294
        %v516 = vadd.s32 %v321, 4294967294
        %v517 = vadd.s32 %v322, 4294967294
        %vm518 = vcmp.ge.s32.totalorder %v515, 0
        %vm519 = vcmp.ge.s32.totalorder %v516, 0
        %vm520 = vcmp.ge.s32.totalorder %v517, 0
        %vm521 = vcmp.lt.s32.totalorder %v515, 16
        %vm522 = vcmp.lt.s32.totalorder %v516, 16
        %vm523 = vcmp.lt.s32.totalorder %v517, 16
        %vm524 = vmand %vm518, %vm521
        %vm525 = vmand %vm519, %vm522
        %vm526 = vmand %vm520, %vm523
        %527 = vrot.lane.b32.xlu0 %v340, 50
        %v528 = vpop.permute.xlu0 %527
        %529 = vrot.lane.b32.xlu0 %v344, 50
        %v530 = vpop.permute.xlu0 %529
        %531 = vrot.lane.b32.xlu0 %v348, 50
        %v532 = vpop.permute.xlu0 %531
        %533 = vrot.lane.b32.xlu0 %v352, 50
        %v534 = vpop.permute.xlu0 %533
        %vm535 = vcmask 408576
        %v536 = vsel %vm535, %v528, %v530
        %v537 = vsel %vm535, %v530, %v532
        %v538 = vsel %vm535, %v532, %v534
        %v542 = vsel %vm524, %v536, 0.0
        %v543 = vsel %vm525, %v537, 0.0
        %v544 = vsel %vm526, %v538, 0.0
        %s545 = sld [smem:[#allocation8 + $0x1]]
        %v546 = vstv %s545
        %v547 = vmul.f32 %v546, %v542
        %v548 = vmul.f32 %v546, %v543
        %v549 = vadd.f32 %v465, %v547
        %v550 = vadd.f32 %v466, %v548
        %s551 = sld [smem:[#allocation8 + $0x8]]
        %v552 = vstv %s551
        %v553 = vmul.f32 %v552, %v542
        %v554 = vmul.f32 %v552, %v543
        %v555 = vmul.f32 %v552, %v544
        %v556 = vadd.f32 %v472, %v553
        %v557 = vadd.f32 %v473, %v554
        %v558 = vadd.f32 %v474, %v555
        %s559 = sld [smem:[#allocation8 + $0xf]]
        %v560 = vstv %s559
        %v561 = vmul.f32 %v560, %v542
        %v562 = vmul.f32 %v560, %v543
        %v563 = vmul.f32 %v560, %v544
        %v564 = vadd.f32 %v480, %v561
        %v565 = vadd.f32 %v481, %v562
        %v566 = vadd.f32 %v482, %v563
        %s567 = sld [smem:[#allocation8 + $0x16]]
        %v568 = vstv %s567
        %v569 = vmul.f32 %v568, %v542
        %v570 = vmul.f32 %v568, %v543
        %v571 = vmul.f32 %v568, %v544
        %v572 = vadd.f32 %v488, %v569
        %v573 = vadd.f32 %v489, %v570
        %v574 = vadd.f32 %v490, %v571
        %s575 = sld [smem:[#allocation8 + $0x1d]]
        %v576 = vstv %s575
        %v577 = vmul.f32 %v576, %v542
        %v578 = vmul.f32 %v576, %v543
        %v579 = vmul.f32 %v576, %v544
        %v580 = vadd.f32 %v496, %v577
        %v581 = vadd.f32 %v497, %v578
        %v582 = vadd.f32 %v498, %v579
        %s583 = sld [smem:[#allocation8 + $0x24]]
        %v584 = vstv %s583
        %v585 = vmul.f32 %v584, %v542
        %v586 = vmul.f32 %v584, %v543
        %v587 = vmul.f32 %v584, %v544
        %v588 = vadd.f32 %v504, %v585
        %v589 = vadd.f32 %v505, %v586
        %v590 = vadd.f32 %v506, %v587
        %s591 = sld [smem:[#allocation8 + $0x2b]]
        %v592 = vstv %s591
        %v593 = vmul.f32 %v592, %v542
        %v594 = vmul.f32 %v592, %v543
        %v595 = vmul.f32 %v592, %v544
        %v596 = vadd.f32 %v512, %v593
        %v597 = vadd.f32 %v513, %v594
        %v598 = vadd.f32 %v514, %v595
        %599 = vrot.lane.b32.xlu0 %v431, 50
        %v600 = vpop.permute.xlu0 %599
        %601 = vrot.lane.b32.xlu0 %v435, 50
        %v602 = vpop.permute.xlu0 %601
        %603 = vrot.lane.b32.xlu0 %v439, 50
        %v604 = vpop.permute.xlu0 %603
        %605 = vrot.lane.b32.xlu0 %v443, 50
        %v606 = vpop.permute.xlu0 %605
        %v607 = vsel %vm535, %v600, %v602
        %v608 = vsel %vm535, %v602, %v604
        %v609 = vsel %vm535, %v604, %v606
        %v613 = vsel %vm524, %v607, 0.0
        %v614 = vsel %vm525, %v608, 0.0
        %v615 = vsel %vm526, %v609, 0.0
        %s616 = sld [smem:[#allocation8 + $0x32]]
        %v617 = vstv %s616
        %v618 = vmul.f32 %v617, %v613
        %v619 = vmul.f32 %v617, %v614
        %v620 = vadd.f32 %v549, %v618
        %v621 = vadd.f32 %v550, %v619
        %s622 = sld [smem:[#allocation8 + $0x39]]
        %v623 = vstv %s622
        %v624 = vmul.f32 %v623, %v613
        %v625 = vmul.f32 %v623, %v614
        %v626 = vmul.f32 %v623, %v615
        %v627 = vadd.f32 %v556, %v624
        %v628 = vadd.f32 %v557, %v625
        %v629 = vadd.f32 %v558, %v626
        %s630 = sld [smem:[#allocation8 + $0x40]]
        %v631 = vstv %s630
        %v632 = vmul.f32 %v631, %v613
        %v633 = vmul.f32 %v631, %v614
        %v634 = vmul.f32 %v631, %v615
        %v635 = vadd.f32 %v564, %v632
        %v636 = vadd.f32 %v565, %v633
        %v637 = vadd.f32 %v566, %v634
        %s638 = sld [smem:[#allocation8 + $0x47]]
        %v639 = vstv %s638
        %v640 = vmul.f32 %v639, %v613
        %v641 = vmul.f32 %v639, %v614
        %v642 = vmul.f32 %v639, %v615
        %v643 = vadd.f32 %v572, %v640
        %v644 = vadd.f32 %v573, %v641
        %v645 = vadd.f32 %v574, %v642
        %s646 = sld [smem:[#allocation8 + $0x4e]]
        %v647 = vstv %s646
        %v648 = vmul.f32 %v647, %v613
        %v649 = vmul.f32 %v647, %v614
        %v650 = vmul.f32 %v647, %v615
        %v651 = vadd.f32 %v580, %v648
        %v652 = vadd.f32 %v581, %v649
        %v653 = vadd.f32 %v582, %v650
        %s654 = sld [smem:[#allocation8 + $0x55]]
        %v655 = vstv %s654
        %v656 = vmul.f32 %v655, %v613
        %v657 = vmul.f32 %v655, %v614
        %v658 = vmul.f32 %v655, %v615
        %v659 = vadd.f32 %v588, %v656
        %v660 = vadd.f32 %v589, %v657
        %v661 = vadd.f32 %v590, %v658
        %s662 = sld [smem:[#allocation8 + $0x5c]]
        %v663 = vstv %s662
        %v664 = vmul.f32 %v663, %v613
        %v665 = vmul.f32 %v663, %v614
        %v666 = vmul.f32 %v663, %v615
        %v667 = vadd.f32 %v596, %v664
        %v668 = vadd.f32 %v597, %v665
        %v669 = vadd.f32 %v598, %v666
        %v670 = vadd.s32 %v320, 4294967295
        %v671 = vadd.s32 %v321, 4294967295
        %v672 = vadd.s32 %v322, 4294967295
        %vm673 = vcmp.ge.s32.totalorder %v670, 0
        %vm674 = vcmp.ge.s32.totalorder %v671, 0
        %vm675 = vcmp.ge.s32.totalorder %v672, 0
        %vm676 = vcmp.lt.s32.totalorder %v670, 16
        %vm677 = vcmp.lt.s32.totalorder %v671, 16
        %vm678 = vcmp.lt.s32.totalorder %v672, 16
        %vm679 = vmand %vm673, %vm676
        %vm680 = vmand %vm674, %vm677
        %vm681 = vmand %vm675, %vm678
        %682 = vrot.lane.b32.xlu0 %v340, 49
        %v683 = vpop.permute.xlu0 %682
        %684 = vrot.lane.b32.xlu0 %v344, 49
        %v685 = vpop.permute.xlu0 %684
        %686 = vrot.lane.b32.xlu0 %v348, 49
        %v687 = vpop.permute.xlu0 %686
        %688 = vrot.lane.b32.xlu0 %v352, 49
        %v689 = vpop.permute.xlu0 %688
        %vm690 = vcmask 400384
        %v691 = vsel %vm690, %v683, %v685
        %v692 = vsel %vm690, %v685, %v687
        %v693 = vsel %vm690, %v687, %v689
        %v697 = vsel %vm679, %v691, 0.0
        %v698 = vsel %vm680, %v692, 0.0
        %v699 = vsel %vm681, %v693, 0.0
        %s700 = sld [smem:[#allocation8 + $0x2]]
        %v701 = vstv %s700
        %v702 = vmul.f32 %v701, %v697
        %v703 = vmul.f32 %v701, %v698
        %v704 = vadd.f32 %v620, %v702
        %v705 = vadd.f32 %v621, %v703
        %s706 = sld [smem:[#allocation8 + $0x9]]
        %v707 = vstv %s706
        %v708 = vmul.f32 %v707, %v697
        %v709 = vmul.f32 %v707, %v698
        %v710 = vmul.f32 %v707, %v699
        %v711 = vadd.f32 %v627, %v708
        %v712 = vadd.f32 %v628, %v709
        %v713 = vadd.f32 %v629, %v710
        %s714 = sld [smem:[#allocation8 + $0x10]]
        %v715 = vstv %s714
        %v716 = vmul.f32 %v715, %v697
        %v717 = vmul.f32 %v715, %v698
        %v718 = vmul.f32 %v715, %v699
        %v719 = vadd.f32 %v635, %v716
        %v720 = vadd.f32 %v636, %v717
        %v721 = vadd.f32 %v637, %v718
        %s722 = sld [smem:[#allocation8 + $0x17]]
        %v723 = vstv %s722
        %v724 = vmul.f32 %v723, %v697
        %v725 = vmul.f32 %v723, %v698
        %v726 = vmul.f32 %v723, %v699
        %v727 = vadd.f32 %v643, %v724
        %v728 = vadd.f32 %v644, %v725
        %v729 = vadd.f32 %v645, %v726
        %s730 = sld [smem:[#allocation8 + $0x1e]]
        %v731 = vstv %s730
        %v732 = vmul.f32 %v731, %v697
        %v733 = vmul.f32 %v731, %v698
        %v734 = vmul.f32 %v731, %v699
        %v735 = vadd.f32 %v651, %v732
        %v736 = vadd.f32 %v652, %v733
        %v737 = vadd.f32 %v653, %v734
        %s738 = sld [smem:[#allocation8 + $0x25]]
        %v739 = vstv %s738
        %v740 = vmul.f32 %v739, %v697
        %v741 = vmul.f32 %v739, %v698
        %v742 = vmul.f32 %v739, %v699
        %v743 = vadd.f32 %v659, %v740
        %v744 = vadd.f32 %v660, %v741
        %v745 = vadd.f32 %v661, %v742
        %s746 = sld [smem:[#allocation8 + $0x2c]]
        %v747 = vstv %s746
        %v748 = vmul.f32 %v747, %v697
        %v749 = vmul.f32 %v747, %v698
        %v750 = vmul.f32 %v747, %v699
        %v751 = vadd.f32 %v667, %v748
        %v752 = vadd.f32 %v668, %v749
        %v753 = vadd.f32 %v669, %v750
        %754 = vrot.lane.b32.xlu0 %v431, 49
        %v755 = vpop.permute.xlu0 %754
        %756 = vrot.lane.b32.xlu0 %v435, 49
        %v757 = vpop.permute.xlu0 %756
        %758 = vrot.lane.b32.xlu0 %v439, 49
        %v759 = vpop.permute.xlu0 %758
        %760 = vrot.lane.b32.xlu0 %v443, 49
        %v761 = vpop.permute.xlu0 %760
        %v762 = vsel %vm690, %v755, %v757
        %v763 = vsel %vm690, %v757, %v759
        %v764 = vsel %vm690, %v759, %v761
        %v768 = vsel %vm679, %v762, 0.0
        %v769 = vsel %vm680, %v763, 0.0
        %v770 = vsel %vm681, %v764, 0.0
        %s771 = sld [smem:[#allocation8 + $0x33]]
        %v772 = vstv %s771
        %v773 = vmul.f32 %v772, %v768
        %v774 = vmul.f32 %v772, %v769
        %v775 = vadd.f32 %v704, %v773
        %v776 = vadd.f32 %v705, %v774
        %s777 = sld [smem:[#allocation8 + $0x3a]]
        %v778 = vstv %s777
        %v779 = vmul.f32 %v778, %v768
        %v780 = vmul.f32 %v778, %v769
        %v781 = vmul.f32 %v778, %v770
        %v782 = vadd.f32 %v711, %v779
        %v783 = vadd.f32 %v712, %v780
        %v784 = vadd.f32 %v713, %v781
        %s785 = sld [smem:[#allocation8 + $0x41]]
        %v786 = vstv %s785
        %v787 = vmul.f32 %v786, %v768
        %v788 = vmul.f32 %v786, %v769
        %v789 = vmul.f32 %v786, %v770
        %v790 = vadd.f32 %v719, %v787
        %v791 = vadd.f32 %v720, %v788
        %v792 = vadd.f32 %v721, %v789
        %s793 = sld [smem:[#allocation8 + $0x48]]
        %v794 = vstv %s793
        %v795 = vmul.f32 %v794, %v768
        %v796 = vmul.f32 %v794, %v769
        %v797 = vmul.f32 %v794, %v770
        %v798 = vadd.f32 %v727, %v795
        %v799 = vadd.f32 %v728, %v796
        %v800 = vadd.f32 %v729, %v797
        %s801 = sld [smem:[#allocation8 + $0x4f]]
        %v802 = vstv %s801
        %v803 = vmul.f32 %v802, %v768
        %v804 = vmul.f32 %v802, %v769
        %v805 = vmul.f32 %v802, %v770
        %v806 = vadd.f32 %v735, %v803
        %v807 = vadd.f32 %v736, %v804
        %v808 = vadd.f32 %v737, %v805
        %s809 = sld [smem:[#allocation8 + $0x56]]
        %v810 = vstv %s809
        %v811 = vmul.f32 %v810, %v768
        %v812 = vmul.f32 %v810, %v769
        %v813 = vmul.f32 %v810, %v770
        %v814 = vadd.f32 %v743, %v811
        %v815 = vadd.f32 %v744, %v812
        %v816 = vadd.f32 %v745, %v813
        %s817 = sld [smem:[#allocation8 + $0x5d]]
        %v818 = vstv %s817
        %v819 = vmul.f32 %v818, %v768
        %v820 = vmul.f32 %v818, %v769
        %v821 = vmul.f32 %v818, %v770
        %v822 = vadd.f32 %v751, %v819
        %v823 = vadd.f32 %v752, %v820
        %v824 = vadd.f32 %v753, %v821
        %vm825 = vcmp.ge.s32.totalorder %v320, 0
        %vm826 = vcmp.ge.s32.totalorder %v321, 0
        %vm827 = vcmp.ge.s32.totalorder %v322, 0
        %vm828 = vcmp.lt.s32.totalorder %v320, 16
        %vm829 = vcmp.lt.s32.totalorder %v321, 16
        %vm830 = vcmp.lt.s32.totalorder %v322, 16
        %vm831 = vmand %vm825, %vm828
        %vm832 = vmand %vm826, %vm829
        %vm833 = vmand %vm827, %vm830
        %834 = vrot.lane.b32.xlu0 %v340, 48
        %v835 = vpop.permute.xlu0 %834
        %836 = vrot.lane.b32.xlu0 %v344, 48
        %v837 = vpop.permute.xlu0 %836
        %838 = vrot.lane.b32.xlu0 %v348, 48
        %v839 = vpop.permute.xlu0 %838
        %840 = vrot.lane.b32.xlu0 %v352, 48
        %v841 = vpop.permute.xlu0 %840
        %vm842 = vcmask 392192
        %v843 = vsel %vm842, %v835, %v837
        %v844 = vsel %vm842, %v837, %v839
        %v845 = vsel %vm842, %v839, %v841
        %v849 = vsel %vm831, %v843, 0.0
        %v850 = vsel %vm832, %v844, 0.0
        %v851 = vsel %vm833, %v845, 0.0
        %s852 = sld [smem:[#allocation8 + $0x3]]
        %v853 = vstv %s852
        %v854 = vmul.f32 %v853, %v849
        %v855 = vmul.f32 %v853, %v850
        %v856 = vadd.f32 %v775, %v854
        %v857 = vadd.f32 %v776, %v855
        %s858 = sld [smem:[#allocation8 + $0xa]]
        %v859 = vstv %s858
        %v860 = vmul.f32 %v859, %v849
        %v861 = vmul.f32 %v859, %v850
        %v862 = vmul.f32 %v859, %v851
        %v863 = vadd.f32 %v782, %v860
        %v864 = vadd.f32 %v783, %v861
        %v865 = vadd.f32 %v784, %v862
        %s866 = sld [smem:[#allocation8 + $0x11]]
        %v867 = vstv %s866
        %v868 = vmul.f32 %v867, %v849
        %v869 = vmul.f32 %v867, %v850
        %v870 = vmul.f32 %v867, %v851
        %v871 = vadd.f32 %v790, %v868
        %v872 = vadd.f32 %v791, %v869
        %v873 = vadd.f32 %v792, %v870
        %s874 = sld [smem:[#allocation8 + $0x18]]
        %v875 = vstv %s874
        %v876 = vmul.f32 %v875, %v849
        %v877 = vmul.f32 %v875, %v850
        %v878 = vmul.f32 %v875, %v851
        %v879 = vadd.f32 %v798, %v876
        %v880 = vadd.f32 %v799, %v877
        %v881 = vadd.f32 %v800, %v878
        %s882 = sld [smem:[#allocation8 + $0x1f]]
        %v883 = vstv %s882
        %v884 = vmul.f32 %v883, %v849
        %v885 = vmul.f32 %v883, %v850
        %v886 = vmul.f32 %v883, %v851
        %v887 = vadd.f32 %v806, %v884
        %v888 = vadd.f32 %v807, %v885
        %v889 = vadd.f32 %v808, %v886
        %s890 = sld [smem:[#allocation8 + $0x26]]
        %v891 = vstv %s890
        %v892 = vmul.f32 %v891, %v849
        %v893 = vmul.f32 %v891, %v850
        %v894 = vmul.f32 %v891, %v851
        %v895 = vadd.f32 %v814, %v892
        %v896 = vadd.f32 %v815, %v893
        %v897 = vadd.f32 %v816, %v894
        %s898 = sld [smem:[#allocation8 + $0x2d]]
        %v899 = vstv %s898
        %v900 = vmul.f32 %v899, %v849
        %v901 = vmul.f32 %v899, %v850
        %v902 = vmul.f32 %v899, %v851
        %v903 = vadd.f32 %v822, %v900
        %v904 = vadd.f32 %v823, %v901
        %v905 = vadd.f32 %v824, %v902
        %906 = vrot.lane.b32.xlu0 %v431, 48
        %v907 = vpop.permute.xlu0 %906
        %908 = vrot.lane.b32.xlu0 %v435, 48
        %v909 = vpop.permute.xlu0 %908
        %910 = vrot.lane.b32.xlu0 %v439, 48
        %v911 = vpop.permute.xlu0 %910
        %912 = vrot.lane.b32.xlu0 %v443, 48
        %v913 = vpop.permute.xlu0 %912
        %v914 = vsel %vm842, %v907, %v909
        %v915 = vsel %vm842, %v909, %v911
        %v916 = vsel %vm842, %v911, %v913
        %v920 = vsel %vm831, %v914, 0.0
        %v921 = vsel %vm832, %v915, 0.0
        %v922 = vsel %vm833, %v916, 0.0
        %s923 = sld [smem:[#allocation8 + $0x34]]
        %v924 = vstv %s923
        %v925 = vmul.f32 %v924, %v920
        %v926 = vmul.f32 %v924, %v921
        %v927 = vadd.f32 %v856, %v925
        %v928 = vadd.f32 %v857, %v926
        %s929 = sld [smem:[#allocation8 + $0x3b]]
        %v930 = vstv %s929
        %v931 = vmul.f32 %v930, %v920
        %v932 = vmul.f32 %v930, %v921
        %v933 = vmul.f32 %v930, %v922
        %v934 = vadd.f32 %v863, %v931
        %v935 = vadd.f32 %v864, %v932
        %v936 = vadd.f32 %v865, %v933
        %s937 = sld [smem:[#allocation8 + $0x42]]
        %v938 = vstv %s937
        %v939 = vmul.f32 %v938, %v920
        %v940 = vmul.f32 %v938, %v921
        %v941 = vmul.f32 %v938, %v922
        %v942 = vadd.f32 %v871, %v939
        %v943 = vadd.f32 %v872, %v940
        %v944 = vadd.f32 %v873, %v941
        %s945 = sld [smem:[#allocation8 + $0x49]]
        %v946 = vstv %s945
        %v947 = vmul.f32 %v946, %v920
        %v948 = vmul.f32 %v946, %v921
        %v949 = vmul.f32 %v946, %v922
        %v950 = vadd.f32 %v879, %v947
        %v951 = vadd.f32 %v880, %v948
        %v952 = vadd.f32 %v881, %v949
        %s953 = sld [smem:[#allocation8 + $0x50]]
        %v954 = vstv %s953
        %v955 = vmul.f32 %v954, %v920
        %v956 = vmul.f32 %v954, %v921
        %v957 = vmul.f32 %v954, %v922
        %v958 = vadd.f32 %v887, %v955
        %v959 = vadd.f32 %v888, %v956
        %v960 = vadd.f32 %v889, %v957
        %s961 = sld [smem:[#allocation8 + $0x57]]
        %v962 = vstv %s961
        %v963 = vmul.f32 %v962, %v920
        %v964 = vmul.f32 %v962, %v921
        %v965 = vmul.f32 %v962, %v922
        %v966 = vadd.f32 %v895, %v963
        %v967 = vadd.f32 %v896, %v964
        %v968 = vadd.f32 %v897, %v965
        %s969 = sld [smem:[#allocation8 + $0x5e]]
        %v970 = vstv %s969
        %v971 = vmul.f32 %v970, %v920
        %v972 = vmul.f32 %v970, %v921
        %v973 = vmul.f32 %v970, %v922
        %v974 = vadd.f32 %v903, %v971
        %v975 = vadd.f32 %v904, %v972
        %v976 = vadd.f32 %v905, %v973
        %v977 = vadd.s32 %v320, 1
        %v978 = vadd.s32 %v321, 1
        %v979 = vadd.s32 %v322, 1
        %vm980 = vcmp.ge.s32.totalorder %v977, 0
        %vm981 = vcmp.ge.s32.totalorder %v978, 0
        %vm982 = vcmp.ge.s32.totalorder %v979, 0
        %vm983 = vcmp.lt.s32.totalorder %v977, 16
        %vm984 = vcmp.lt.s32.totalorder %v978, 16
        %vm985 = vcmp.lt.s32.totalorder %v979, 16
        %vm986 = vmand %vm980, %vm983
        %vm987 = vmand %vm981, %vm984
        %vm988 = vmand %vm982, %vm985
        %989 = vrot.lane.b32.xlu0 %v340, 47
        %v990 = vpop.permute.xlu0 %989
        %991 = vrot.lane.b32.xlu0 %v344, 47
        %v992 = vpop.permute.xlu0 %991
        %993 = vrot.lane.b32.xlu0 %v348, 47
        %v994 = vpop.permute.xlu0 %993
        %995 = vrot.lane.b32.xlu0 %v352, 47
        %v996 = vpop.permute.xlu0 %995
        %vm997 = vcmask 384000
        %v998 = vsel %vm997, %v990, %v992
        %v999 = vsel %vm997, %v992, %v994
        %v1000 = vsel %vm997, %v994, %v996
        %v1004 = vsel %vm986, %v998, 0.0
        %v1005 = vsel %vm987, %v999, 0.0
        %v1006 = vsel %vm988, %v1000, 0.0
        %s1007 = sld [smem:[#allocation8 + $0x4]]
        %v1008 = vstv %s1007
        %v1009 = vmul.f32 %v1008, %v1004
        %v1010 = vmul.f32 %v1008, %v1005
        %v1011 = vadd.f32 %v927, %v1009
        %v1012 = vadd.f32 %v928, %v1010
        %s1013 = sld [smem:[#allocation8 + $0xb]]
        %v1014 = vstv %s1013
        %v1015 = vmul.f32 %v1014, %v1004
        %v1016 = vmul.f32 %v1014, %v1005
        %v1017 = vmul.f32 %v1014, %v1006
        %v1018 = vadd.f32 %v934, %v1015
        %v1019 = vadd.f32 %v935, %v1016
        %v1020 = vadd.f32 %v936, %v1017
        %s1021 = sld [smem:[#allocation8 + $0x12]]
        %v1022 = vstv %s1021
        %v1023 = vmul.f32 %v1022, %v1004
        %v1024 = vmul.f32 %v1022, %v1005
        %v1025 = vmul.f32 %v1022, %v1006
        %v1026 = vadd.f32 %v942, %v1023
        %v1027 = vadd.f32 %v943, %v1024
        %v1028 = vadd.f32 %v944, %v1025
        %s1029 = sld [smem:[#allocation8 + $0x19]]
        %v1030 = vstv %s1029
        %v1031 = vmul.f32 %v1030, %v1004
        %v1032 = vmul.f32 %v1030, %v1005
        %v1033 = vmul.f32 %v1030, %v1006
        %v1034 = vadd.f32 %v950, %v1031
        %v1035 = vadd.f32 %v951, %v1032
        %v1036 = vadd.f32 %v952, %v1033
        %s1037 = sld [smem:[#allocation8 + $0x20]]
        %v1038 = vstv %s1037
        %v1039 = vmul.f32 %v1038, %v1004
        %v1040 = vmul.f32 %v1038, %v1005
        %v1041 = vmul.f32 %v1038, %v1006
        %v1042 = vadd.f32 %v958, %v1039
        %v1043 = vadd.f32 %v959, %v1040
        %v1044 = vadd.f32 %v960, %v1041
        %s1045 = sld [smem:[#allocation8 + $0x27]]
        %v1046 = vstv %s1045
        %v1047 = vmul.f32 %v1046, %v1004
        %v1048 = vmul.f32 %v1046, %v1005
        %v1049 = vmul.f32 %v1046, %v1006
        %v1050 = vadd.f32 %v966, %v1047
        %v1051 = vadd.f32 %v967, %v1048
        %v1052 = vadd.f32 %v968, %v1049
        %s1053 = sld [smem:[#allocation8 + $0x2e]]
        %v1054 = vstv %s1053
        %v1055 = vmul.f32 %v1054, %v1004
        %v1056 = vmul.f32 %v1054, %v1005
        %v1057 = vmul.f32 %v1054, %v1006
        %v1058 = vadd.f32 %v974, %v1055
        %v1059 = vadd.f32 %v975, %v1056
        %v1060 = vadd.f32 %v976, %v1057
        %1061 = vrot.lane.b32.xlu0 %v431, 47
        %v1062 = vpop.permute.xlu0 %1061
        %1063 = vrot.lane.b32.xlu0 %v435, 47
        %v1064 = vpop.permute.xlu0 %1063
        %1065 = vrot.lane.b32.xlu0 %v439, 47
        %v1066 = vpop.permute.xlu0 %1065
        %1067 = vrot.lane.b32.xlu0 %v443, 47
        %v1068 = vpop.permute.xlu0 %1067
        %v1069 = vsel %vm997, %v1062, %v1064
        %v1070 = vsel %vm997, %v1064, %v1066
        %v1071 = vsel %vm997, %v1066, %v1068
        %v1075 = vsel %vm986, %v1069, 0.0
        %v1076 = vsel %vm987, %v1070, 0.0
        %v1077 = vsel %vm988, %v1071, 0.0
        %s1078 = sld [smem:[#allocation8 + $0x35]]
        %v1079 = vstv %s1078
        %v1080 = vmul.f32 %v1079, %v1075
        %v1081 = vmul.f32 %v1079, %v1076
        %v1082 = vadd.f32 %v1011, %v1080
        %v1083 = vadd.f32 %v1012, %v1081
        %s1084 = sld [smem:[#allocation8 + $0x3c]]
        %v1085 = vstv %s1084
        %v1086 = vmul.f32 %v1085, %v1075
        %v1087 = vmul.f32 %v1085, %v1076
        %v1088 = vmul.f32 %v1085, %v1077
        %v1089 = vadd.f32 %v1018, %v1086
        %v1090 = vadd.f32 %v1019, %v1087
        %v1091 = vadd.f32 %v1020, %v1088
        %s1092 = sld [smem:[#allocation8 + $0x43]]
        %v1093 = vstv %s1092
        %v1094 = vmul.f32 %v1093, %v1075
        %v1095 = vmul.f32 %v1093, %v1076
        %v1096 = vmul.f32 %v1093, %v1077
        %v1097 = vadd.f32 %v1026, %v1094
        %v1098 = vadd.f32 %v1027, %v1095
        %v1099 = vadd.f32 %v1028, %v1096
        %s1100 = sld [smem:[#allocation8 + $0x4a]]
        %v1101 = vstv %s1100
        %v1102 = vmul.f32 %v1101, %v1075
        %v1103 = vmul.f32 %v1101, %v1076
        %v1104 = vmul.f32 %v1101, %v1077
        %v1105 = vadd.f32 %v1034, %v1102
        %v1106 = vadd.f32 %v1035, %v1103
        %v1107 = vadd.f32 %v1036, %v1104
        %s1108 = sld [smem:[#allocation8 + $0x51]]
        %v1109 = vstv %s1108
        %v1110 = vmul.f32 %v1109, %v1075
        %v1111 = vmul.f32 %v1109, %v1076
        %v1112 = vmul.f32 %v1109, %v1077
        %v1113 = vadd.f32 %v1042, %v1110
        %v1114 = vadd.f32 %v1043, %v1111
        %v1115 = vadd.f32 %v1044, %v1112
        %s1116 = sld [smem:[#allocation8 + $0x58]]
        %v1117 = vstv %s1116
        %v1118 = vmul.f32 %v1117, %v1075
        %v1119 = vmul.f32 %v1117, %v1076
        %v1120 = vmul.f32 %v1117, %v1077
        %v1121 = vadd.f32 %v1050, %v1118
        %v1122 = vadd.f32 %v1051, %v1119
        %v1123 = vadd.f32 %v1052, %v1120
        %s1124 = sld [smem:[#allocation8 + $0x5f]]
        %v1125 = vstv %s1124
        %v1126 = vmul.f32 %v1125, %v1075
        %v1127 = vmul.f32 %v1125, %v1076
        %v1128 = vmul.f32 %v1125, %v1077
        %v1129 = vadd.f32 %v1058, %v1126
        %v1130 = vadd.f32 %v1059, %v1127
        %v1131 = vadd.f32 %v1060, %v1128
        %v1132 = vadd.s32 %v320, 2
        %v1133 = vadd.s32 %v321, 2
        %v1134 = vadd.s32 %v322, 2
        %vm1135 = vcmp.ge.s32.totalorder %v1132, 0
        %vm1136 = vcmp.ge.s32.totalorder %v1133, 0
        %vm1137 = vcmp.ge.s32.totalorder %v1134, 0
        %vm1138 = vcmp.lt.s32.totalorder %v1132, 16
        %vm1139 = vcmp.lt.s32.totalorder %v1133, 16
        %vm1140 = vcmp.lt.s32.totalorder %v1134, 16
        %vm1141 = vmand %vm1135, %vm1138
        %vm1142 = vmand %vm1136, %vm1139
        %vm1143 = vmand %vm1137, %vm1140
        %1144 = vrot.lane.b32.xlu0 %v340, 46
        %v1145 = vpop.permute.xlu0 %1144
        %1146 = vrot.lane.b32.xlu0 %v344, 46
        %v1147 = vpop.permute.xlu0 %1146
        %1148 = vrot.lane.b32.xlu0 %v348, 46
        %v1149 = vpop.permute.xlu0 %1148
        %1150 = vrot.lane.b32.xlu0 %v352, 46
        %v1151 = vpop.permute.xlu0 %1150
        %vm1152 = vcmask 375808
        %v1153 = vsel %vm1152, %v1145, %v1147
        %v1154 = vsel %vm1152, %v1147, %v1149
        %v1155 = vsel %vm1152, %v1149, %v1151
        %v1159 = vsel %vm1141, %v1153, 0.0
        %v1160 = vsel %vm1142, %v1154, 0.0
        %v1161 = vsel %vm1143, %v1155, 0.0
        %s1162 = sld [smem:[#allocation8 + $0x5]]
        %v1163 = vstv %s1162
        %v1164 = vmul.f32 %v1163, %v1159
        %v1165 = vmul.f32 %v1163, %v1160
        %v1166 = vadd.f32 %v1082, %v1164
        %v1167 = vadd.f32 %v1083, %v1165
        %s1168 = sld [smem:[#allocation8 + $0xc]]
        %v1169 = vstv %s1168
        %v1170 = vmul.f32 %v1169, %v1159
        %v1171 = vmul.f32 %v1169, %v1160
        %v1172 = vmul.f32 %v1169, %v1161
        %v1173 = vadd.f32 %v1089, %v1170
        %v1174 = vadd.f32 %v1090, %v1171
        %v1175 = vadd.f32 %v1091, %v1172
        %s1176 = sld [smem:[#allocation8 + $0x13]]
        %v1177 = vstv %s1176
        %v1178 = vmul.f32 %v1177, %v1159
        %v1179 = vmul.f32 %v1177, %v1160
        %v1180 = vmul.f32 %v1177, %v1161
        %v1181 = vadd.f32 %v1097, %v1178
        %v1182 = vadd.f32 %v1098, %v1179
        %v1183 = vadd.f32 %v1099, %v1180
        %s1184 = sld [smem:[#allocation8 + $0x1a]]
        %v1185 = vstv %s1184
        %v1186 = vmul.f32 %v1185, %v1159
        %v1187 = vmul.f32 %v1185, %v1160
        %v1188 = vmul.f32 %v1185, %v1161
        %v1189 = vadd.f32 %v1105, %v1186
        %v1190 = vadd.f32 %v1106, %v1187
        %v1191 = vadd.f32 %v1107, %v1188
        %s1192 = sld [smem:[#allocation8 + $0x21]]
        %v1193 = vstv %s1192
        %v1194 = vmul.f32 %v1193, %v1159
        %v1195 = vmul.f32 %v1193, %v1160
        %v1196 = vmul.f32 %v1193, %v1161
        %v1197 = vadd.f32 %v1113, %v1194
        %v1198 = vadd.f32 %v1114, %v1195
        %v1199 = vadd.f32 %v1115, %v1196
        %s1200 = sld [smem:[#allocation8 + $0x28]]
        %v1201 = vstv %s1200
        %v1202 = vmul.f32 %v1201, %v1159
        %v1203 = vmul.f32 %v1201, %v1160
        %v1204 = vmul.f32 %v1201, %v1161
        %v1205 = vadd.f32 %v1121, %v1202
        %v1206 = vadd.f32 %v1122, %v1203
        %v1207 = vadd.f32 %v1123, %v1204
        %s1208 = sld [smem:[#allocation8 + $0x2f]]
        %v1209 = vstv %s1208
        %v1210 = vmul.f32 %v1209, %v1159
        %v1211 = vmul.f32 %v1209, %v1160
        %v1212 = vmul.f32 %v1209, %v1161
        %v1213 = vadd.f32 %v1129, %v1210
        %v1214 = vadd.f32 %v1130, %v1211
        %v1215 = vadd.f32 %v1131, %v1212
        %1216 = vrot.lane.b32.xlu0 %v431, 46
        %v1217 = vpop.permute.xlu0 %1216
        %1218 = vrot.lane.b32.xlu0 %v435, 46
        %v1219 = vpop.permute.xlu0 %1218
        %1220 = vrot.lane.b32.xlu0 %v439, 46
        %v1221 = vpop.permute.xlu0 %1220
        %1222 = vrot.lane.b32.xlu0 %v443, 46
        %v1223 = vpop.permute.xlu0 %1222
        %v1224 = vsel %vm1152, %v1217, %v1219
        %v1225 = vsel %vm1152, %v1219, %v1221
        %v1226 = vsel %vm1152, %v1221, %v1223
        %v1230 = vsel %vm1141, %v1224, 0.0
        %v1231 = vsel %vm1142, %v1225, 0.0
        %v1232 = vsel %vm1143, %v1226, 0.0
        %s1233 = sld [smem:[#allocation8 + $0x36]]
        %v1234 = vstv %s1233
        %v1235 = vmul.f32 %v1234, %v1230
        %v1236 = vmul.f32 %v1234, %v1231
        %v1237 = vadd.f32 %v1166, %v1235
        %v1238 = vadd.f32 %v1167, %v1236
        %s1239 = sld [smem:[#allocation8 + $0x3d]]
        %v1240 = vstv %s1239
        %v1241 = vmul.f32 %v1240, %v1230
        %v1242 = vmul.f32 %v1240, %v1231
        %v1243 = vmul.f32 %v1240, %v1232
        %v1244 = vadd.f32 %v1173, %v1241
        %v1245 = vadd.f32 %v1174, %v1242
        %v1246 = vadd.f32 %v1175, %v1243
        %s1247 = sld [smem:[#allocation8 + $0x44]]
        %v1248 = vstv %s1247
        %v1249 = vmul.f32 %v1248, %v1230
        %v1250 = vmul.f32 %v1248, %v1231
        %v1251 = vmul.f32 %v1248, %v1232
        %v1252 = vadd.f32 %v1181, %v1249
        %v1253 = vadd.f32 %v1182, %v1250
        %v1254 = vadd.f32 %v1183, %v1251
        %s1255 = sld [smem:[#allocation8 + $0x4b]]
        %v1256 = vstv %s1255
        %v1257 = vmul.f32 %v1256, %v1230
        %v1258 = vmul.f32 %v1256, %v1231
        %v1259 = vmul.f32 %v1256, %v1232
        %v1260 = vadd.f32 %v1189, %v1257
        %v1261 = vadd.f32 %v1190, %v1258
        %v1262 = vadd.f32 %v1191, %v1259
        %s1263 = sld [smem:[#allocation8 + $0x52]]
        %v1264 = vstv %s1263
        %v1265 = vmul.f32 %v1264, %v1230
        %v1266 = vmul.f32 %v1264, %v1231
        %v1267 = vmul.f32 %v1264, %v1232
        %v1268 = vadd.f32 %v1197, %v1265
        %v1269 = vadd.f32 %v1198, %v1266
        %v1270 = vadd.f32 %v1199, %v1267
        %s1271 = sld [smem:[#allocation8 + $0x59]]
        %v1272 = vstv %s1271
        %v1273 = vmul.f32 %v1272, %v1230
        %v1274 = vmul.f32 %v1272, %v1231
        %v1275 = vmul.f32 %v1272, %v1232
        %v1276 = vadd.f32 %v1205, %v1273
        %v1277 = vadd.f32 %v1206, %v1274
        %v1278 = vadd.f32 %v1207, %v1275
        %s1279 = sld [smem:[#allocation8 + $0x60]]
        %v1280 = vstv %s1279
        %v1281 = vmul.f32 %v1280, %v1230
        %v1282 = vmul.f32 %v1280, %v1231
        %v1283 = vmul.f32 %v1280, %v1232
        %v1284 = vadd.f32 %v1213, %v1281
        %v1285 = vadd.f32 %v1214, %v1282
        %v1286 = vadd.f32 %v1215, %v1283
        %v1287 = vadd.s32 %v320, 3
        %v1288 = vadd.s32 %v321, 3
        %v1289 = vadd.s32 %v322, 3
        %vm1290 = vcmp.ge.s32.totalorder %v1287, 0
        %vm1291 = vcmp.ge.s32.totalorder %v1288, 0
        %vm1292 = vcmp.ge.s32.totalorder %v1289, 0
        %vm1293 = vcmp.lt.s32.totalorder %v1287, 16
        %vm1294 = vcmp.lt.s32.totalorder %v1288, 16
        %vm1295 = vcmp.lt.s32.totalorder %v1289, 16
        %vm1296 = vmand %vm1290, %vm1293
        %vm1297 = vmand %vm1291, %vm1294
        %vm1298 = vmand %vm1292, %vm1295
        %1299 = vrot.lane.b32.xlu0 %v340, 45
        %v1300 = vpop.permute.xlu0 %1299
        %1301 = vrot.lane.b32.xlu0 %v344, 45
        %v1302 = vpop.permute.xlu0 %1301
        %1303 = vrot.lane.b32.xlu0 %v348, 45
        %v1304 = vpop.permute.xlu0 %1303
        %1305 = vrot.lane.b32.xlu0 %v352, 45
        %v1306 = vpop.permute.xlu0 %1305
        %vm1307 = vcmask 367616
        %v1308 = vsel %vm1307, %v1300, %v1302
        %v1309 = vsel %vm1307, %v1302, %v1304
        %v1310 = vsel %vm1307, %v1304, %v1306
        %v1314 = vsel %vm1296, %v1308, 0.0
        %v1315 = vsel %vm1297, %v1309, 0.0
        %v1316 = vsel %vm1298, %v1310, 0.0
        %s1317 = sld [smem:[#allocation8 + $0x6]]
        %v1318 = vstv %s1317
        %v1319 = vmul.f32 %v1318, %v1314
        %v1320 = vmul.f32 %v1318, %v1315
        %v1321 = vadd.f32 %v1237, %v1319
        %v1322 = vadd.f32 %v1238, %v1320
        %s1323 = sld [smem:[#allocation8 + $0xd]]
        %v1324 = vstv %s1323
        %v1325 = vmul.f32 %v1324, %v1314
        %v1326 = vmul.f32 %v1324, %v1315
        %v1327 = vmul.f32 %v1324, %v1316
        %v1328 = vadd.f32 %v1244, %v1325
        %v1329 = vadd.f32 %v1245, %v1326
        %v1330 = vadd.f32 %v1246, %v1327
        %s1331 = sld [smem:[#allocation8 + $0x14]]
        %v1332 = vstv %s1331
        %v1333 = vmul.f32 %v1332, %v1314
        %v1334 = vmul.f32 %v1332, %v1315
        %v1335 = vmul.f32 %v1332, %v1316
        %v1336 = vadd.f32 %v1252, %v1333
        %v1337 = vadd.f32 %v1253, %v1334
        %v1338 = vadd.f32 %v1254, %v1335
        %s1339 = sld [smem:[#allocation8 + $0x1b]]
        %v1340 = vstv %s1339
        %v1341 = vmul.f32 %v1340, %v1314
        %v1342 = vmul.f32 %v1340, %v1315
        %v1343 = vmul.f32 %v1340, %v1316
        %v1344 = vadd.f32 %v1260, %v1341
        %v1345 = vadd.f32 %v1261, %v1342
        %v1346 = vadd.f32 %v1262, %v1343
        %s1347 = sld [smem:[#allocation8 + $0x22]]
        %v1348 = vstv %s1347
        %v1349 = vmul.f32 %v1348, %v1314
        %v1350 = vmul.f32 %v1348, %v1315
        %v1351 = vmul.f32 %v1348, %v1316
        %v1352 = vadd.f32 %v1268, %v1349
        %v1353 = vadd.f32 %v1269, %v1350
        %v1354 = vadd.f32 %v1270, %v1351
        %s1355 = sld [smem:[#allocation8 + $0x29]]
        %v1356 = vstv %s1355
        %v1357 = vmul.f32 %v1356, %v1314
        %v1358 = vmul.f32 %v1356, %v1315
        %v1359 = vmul.f32 %v1356, %v1316
        %v1360 = vadd.f32 %v1276, %v1357
        %v1361 = vadd.f32 %v1277, %v1358
        %v1362 = vadd.f32 %v1278, %v1359
        %s1363 = sld [smem:[#allocation8 + $0x30]]
        %v1364 = vstv %s1363
        %v1365 = vmul.f32 %v1364, %v1314
        %v1366 = vmul.f32 %v1364, %v1315
        %v1367 = vmul.f32 %v1364, %v1316
        %v1368 = vadd.f32 %v1284, %v1365
        %v1369 = vadd.f32 %v1285, %v1366
        %v1370 = vadd.f32 %v1286, %v1367
        %1371 = vrot.lane.b32.xlu0 %v431, 45
        %v1372 = vpop.permute.xlu0 %1371
        %1373 = vrot.lane.b32.xlu0 %v435, 45
        %v1374 = vpop.permute.xlu0 %1373
        %1375 = vrot.lane.b32.xlu0 %v439, 45
        %v1376 = vpop.permute.xlu0 %1375
        %1377 = vrot.lane.b32.xlu0 %v443, 45
        %v1378 = vpop.permute.xlu0 %1377
        %v1379 = vsel %vm1307, %v1372, %v1374
        %v1380 = vsel %vm1307, %v1374, %v1376
        %v1381 = vsel %vm1307, %v1376, %v1378
        %v1385 = vsel %vm1296, %v1379, 0.0
        %v1386 = vsel %vm1297, %v1380, 0.0
        %v1387 = vsel %vm1298, %v1381, 0.0
        %s1388 = sld [smem:[#allocation8 + $0x37]]
        %v1389 = vstv %s1388
        %v1390 = vmul.f32 %v1389, %v1385
        %v1391 = vmul.f32 %v1389, %v1386
        %v1392 = vadd.f32 %v1321, %v1390
        %v1393 = vadd.f32 %v1322, %v1391
        %s1394 = sld [smem:[#allocation8 + $0x3e]]
        %v1395 = vstv %s1394
        %v1396 = vmul.f32 %v1395, %v1385
        %v1397 = vmul.f32 %v1395, %v1386
        %v1398 = vmul.f32 %v1395, %v1387
        %v1399 = vadd.f32 %v1328, %v1396
        %v1400 = vadd.f32 %v1329, %v1397
        %v1401 = vadd.f32 %v1330, %v1398
        %s1402 = sld [smem:[#allocation8 + $0x45]]
        %v1403 = vstv %s1402
        %v1404 = vmul.f32 %v1403, %v1385
        %v1405 = vmul.f32 %v1403, %v1386
        %v1406 = vmul.f32 %v1403, %v1387
        %v1407 = vadd.f32 %v1336, %v1404
        %v1408 = vadd.f32 %v1337, %v1405
        %v1409 = vadd.f32 %v1338, %v1406
        %s1410 = sld [smem:[#allocation8 + $0x4c]]
        %v1411 = vstv %s1410
        %v1412 = vmul.f32 %v1411, %v1385
        %v1413 = vmul.f32 %v1411, %v1386
        %v1414 = vmul.f32 %v1411, %v1387
        %v1415 = vadd.f32 %v1344, %v1412
        %v1416 = vadd.f32 %v1345, %v1413
        %v1417 = vadd.f32 %v1346, %v1414
        %s1418 = sld [smem:[#allocation8 + $0x53]]
        %v1419 = vstv %s1418
        %v1420 = vmul.f32 %v1419, %v1385
        %v1421 = vmul.f32 %v1419, %v1386
        %v1422 = vmul.f32 %v1419, %v1387
        %v1423 = vadd.f32 %v1352, %v1420
        %v1424 = vadd.f32 %v1353, %v1421
        %v1425 = vadd.f32 %v1354, %v1422
        %s1426 = sld [smem:[#allocation8 + $0x5a]]
        %v1427 = vstv %s1426
        %v1428 = vmul.f32 %v1427, %v1385
        %v1429 = vmul.f32 %v1427, %v1386
        %v1430 = vmul.f32 %v1427, %v1387
        %v1431 = vadd.f32 %v1360, %v1428
        %v1432 = vadd.f32 %v1361, %v1429
        %v1433 = vadd.f32 %v1362, %v1430
        %s1434 = sld [smem:[#allocation8 + $0x61]]
        %v1435 = vstv %s1434
        %v1436 = vmul.f32 %v1435, %v1385
        %v1437 = vmul.f32 %v1435, %v1386
        %v1438 = vmul.f32 %v1435, %v1387
        %v1439 = vadd.f32 %v1368, %v1436
        %v1440 = vadd.f32 %v1369, %v1437
        %v1441 = vadd.f32 %v1370, %v1438
        %v1442 = vadd.f32 %v1392, 0.0
        %v1443 = vadd.f32 %v1393, 0.0
        %1447 = vrot.lane.b32.xlu0 %v1399, 112
        %v1448 = vpop.permute.xlu0 %1447
        %1449 = vrot.lane.b32.xlu0 %v1400, 112
        %v1450 = vpop.permute.xlu0 %1449
        %1451 = vrot.lane.b32.xlu0 %v1401, 112
        %v1452 = vpop.permute.xlu0 %1451
        %vm1453 = vcmask 916480
        %v1454 = vsel %vm1453, %v1448, %v1450
        %v1455 = vsel %vm1453, %v1450, %v1452
        %v1458 = vadd.f32 %v1442, %v1454
        %v1459 = vadd.f32 %v1443, %v1455
        %1463 = vrot.lane.b32.xlu0 %v1407, 96
        %v1464 = vpop.permute.xlu0 %1463
        %1465 = vrot.lane.b32.xlu0 %v1408, 96
        %v1466 = vpop.permute.xlu0 %1465
        %1467 = vrot.lane.b32.xlu0 %v1409, 96
        %v1468 = vpop.permute.xlu0 %1467
        %vm1469 = vcmask 785408
        %v1470 = vsel %vm1469, %v1464, %v1466
        %v1471 = vsel %vm1469, %v1466, %v1468
        %v1474 = vadd.f32 %v1458, %v1470
        %v1475 = vadd.f32 %v1459, %v1471
        %1479 = vrot.lane.b32.xlu0 %v1415, 80
        %v1480 = vpop.permute.xlu0 %1479
        %1481 = vrot.lane.b32.xlu0 %v1416, 80
        %v1482 = vpop.permute.xlu0 %1481
        %1483 = vrot.lane.b32.xlu0 %v1417, 80
        %v1484 = vpop.permute.xlu0 %1483
        %vm1485 = vcmask 654336
        %v1486 = vsel %vm1485, %v1480, %v1482
        %v1487 = vsel %vm1485, %v1482, %v1484
        %v1490 = vadd.f32 %v1474, %v1486
        %v1491 = vadd.f32 %v1475, %v1487
        %1495 = vrot.lane.b32.xlu0 %v1423, 64
        %v1496 = vpop.permute.xlu0 %1495
        %1497 = vrot.lane.b32.xlu0 %v1424, 64
        %v1498 = vpop.permute.xlu0 %1497
        %1499 = vrot.lane.b32.xlu0 %v1425, 64
        %v1500 = vpop.permute.xlu0 %1499
        %vm1501 = vcmask 523264
        %v1502 = vsel %vm1501, %v1496, %v1498
        %v1503 = vsel %vm1501, %v1498, %v1500
        %v1506 = vadd.f32 %v1490, %v1502
        %v1507 = vadd.f32 %v1491, %v1503
        %1511 = vrot.lane.b32.xlu0 %v1431, 48
        %v1512 = vpop.permute.xlu0 %1511
        %1513 = vrot.lane.b32.xlu0 %v1432, 48
        %v1514 = vpop.permute.xlu0 %1513
        %1515 = vrot.lane.b32.xlu0 %v1433, 48
        %v1516 = vpop.permute.xlu0 %1515
        %v1517 = vsel %vm842, %v1512, %v1514
        %v1518 = vsel %vm842, %v1514, %v1516
        %v1521 = vadd.f32 %v1506, %v1517
        %v1522 = vadd.f32 %v1507, %v1518
        %1526 = vrot.lane.b32.xlu0 %v1439, 32
        %v1527 = vpop.permute.xlu0 %1526
        %1528 = vrot.lane.b32.xlu0 %v1440, 32
        %v1529 = vpop.permute.xlu0 %1528
        %1530 = vrot.lane.b32.xlu0 %v1441, 32
        %v1531 = vpop.permute.xlu0 %1530
        %vm1532 = vcmask 261120
        %v1533 = vsel %vm1532, %v1527, %v1529
        %v1534 = vsel %vm1532, %v1529, %v1531
        %v1537 = vadd.f32 %v1521, %v1533
        %v1538 = vadd.f32 %v1522, %v1534
        %s1539 = sld [smem:[#allocation3]]
        %v1540 = vstv %s1539
        %v1541 = vadd.f32 %v1537, %v1540
        %v1542 = vadd.f32 %v1538, %v1540
        %v1543 = vxor.u32 %v1541, 2147483648
        %v1544 = vxor.u32 %v1542, 2147483648
        %v1545 = vmul.f32 %v1543, 1.442695
        %v1546 = vpow.pop %v1545
        %v1547 = vmul.f32 %v1544, 1.442695
        %v1548 = vpow.pop %v1547
        %v1549 = vadd.f32 %v1546, 1.0
        %v1550 = vadd.f32 %v1548, 1.0
        %v1551 = vrcp.pop %v1549
        %v1552 = vmul.f32 1.0, %v1551
        %v1553 = vrcp.pop %v1550
        %v1554 = vmul.f32 1.0, %v1553
        %v1555 = vld [vmem:[%s174] sm:$0xff]
        %v1556 = vlaneseq
        %v1557 = vshrl.u32 %v1556, 7
        %v1558 = vsub.s32 0, %v1557
        %v1559 = vrot.slane %v1552, %v1558
        %v1560 = vlaneseq
        %v1561 = vshrl.u32 %v1560, 7
        %v1562 = vsub.s32 0, %v1561
        %v1563 = vrot.slane %v1554, %v1562
        %v1566 = vcombine.low %v1559, %v1563
        %v1568 = vmul.f32 %v1555, %v1566
        %1569 = vst [vmem:[%s201] sm:$0xff] %v1568
        %s1570 = sand.u32 %s98, 1
        %s1571 = scalar_lea.sflag [#allocation6], %s1570
        %s1572 = sand.u32 %s98, 1
        %s1573 = smul.addr %s1572, 8
        %s1574 = scalar_lea.vmem [#allocation9], %s1573
        // Predicated region
        $region41: #{tpu_custom_call.1} parent=31 // pred_check
          %p1575 = pneg %p108
        $region42: #{tpu_custom_call.1} parent=31 // pred_check_branch
          %1577 = sbr.rel (%p1575) target = $region44
        $region43: #{tpu_custom_call.1} parent=31 // pred_region
          %s1579 = ssub.s32 128, 128
          %1580 = vsyncadd %s1571, %s1579
          %s1581 = smul.addr %s22, 2
          %s1582 = smul.addr %s1581, 64
          %s1583 = scalar_lea.hbm %s3, %s1582
          %s1585 = sshll.u32 %s1574, 4
          %s1586 = int_to_ptr.vmem [resolvable:$true] %s1585
          %1588 = dma.vmem_to_hbm [thread:$0]  %s1586, 128, %s1583, %s1571
        $region44: #{tpu_custom_call.1} parent=31 // pred_fallthru
          _
      $region32: #{tpu_custom_call.1} parent=5 // pred_fallthru
        _
      %p1589 = scmp.le.s32.totalorder 2, %s17
      // Predicated region
      $region45: #{tpu_custom_call.1} parent=5 // pred_check
        %p1590 = pneg %p1589
      $region46: #{tpu_custom_call.1} parent=5 // pred_check_branch
        %1592 = sbr.rel (%p1590) target = $region48
      $region47: #{tpu_custom_call.1} parent=5 // pred_region
        %s1593 = ssub.s32 %s17, 2
        // Predicated region
        $region49: #{tpu_custom_call.1} parent=47 // pred_check
          %p1594 = pneg %p114
        $region50: #{tpu_custom_call.1} parent=47 // pred_check_branch
          %1596 = sbr.rel (%p1594) target = $region52
        $region51: #{tpu_custom_call.1} parent=47 // pred_region
          %s1597 = sand.u32 %s99, 1
          %s1598 = scalar_lea.sflag [#allocation6], %s1597
          %s1599 = sand.u32 %s99, 1
          %s1600 = smul.addr %s1599, 8
          %s1601 = scalar_lea.vmem [#allocation9], %s1600
          %1602 = dma.done %s1598, 128
        $region52: #{tpu_custom_call.1} parent=47 // pred_fallthru
          _
      $region48: #{tpu_custom_call.1} parent=5 // pred_fallthru
        _
    $region6: #{tpu_custom_call.1} parent=1 // loop_footer
      %s21 = sadd.s32 1, %s17
    $region7: #{tpu_custom_call.1} parent=1 // loop_footer_branch
      %16 = sbr.rel target = $region3
    $region8: #{tpu_custom_call.1} parent=1 // loop_exit
      _
    %1603 = vsyncpa [#allocation5], 1
    %s1604 = scalar_lea.sflag [#allocation5], 1
    %1605 = vsyncpa %s1604, 1
    %1606 = vsyncpa [#allocation6], 1
    %s1607 = scalar_lea.sflag [#allocation6], 1
    %1608 = vsyncpa %s1607, 1
    %1609 = vsyncpa [#allocation7], 1
    %s1610 = scalar_lea.sflag [#allocation7], 1
    %1611 = vsyncpa %s1610, 1

</llo_original>
